<compile_context>
chip_gen: v7x
topology: tpu7x:2x2x1
jax: 0.10.0
libtpu: 0.0.40
codegen_flags: <defaults>
</compile_context>

<pallas_src>
from functools import partial

import jax
import jax.numpy as jnp
from jax.experimental import pallas as pl
from jax.experimental.pallas import tpu as pltpu


# ------------------------------------------------------------------ VMEM budget

def _vmem_budget():
    """Per-generation scoped-VMEM limit and per-block byte target."""
    cap = 64 * 1024 * 1024          # conservative fallback (v7x-sized part)
    try:
        info = pltpu.get_tpu_info()
        cap = int(getattr(info, "vmem_capacity_bytes", cap)) or cap
    except Exception:
        pass
    limit = min(cap // 2, 96 * 1024 * 1024)       # 32 MiB on 64 MiB parts, 64 MiB on 128 MiB parts
    target = max(limit // 8, 2 * 1024 * 1024)
    return limit, target


_VMEM_LIMIT, _BLOCK_TARGET = _vmem_budget()
_ROW_TILE = 512 if _VMEM_LIMIT >= 48 * 1024 * 1024 else 256


def _cp(sem):
    return pltpu.CompilerParams(dimension_semantics=sem,
                                vmem_limit_bytes=_VMEM_LIMIT)


def _row_tile(m):
    """Fixed row tile; trailing partial blocks are handled via pl.cdiv grid."""
    return m if m <= _ROW_TILE else _ROW_TILE


def _pick_tn(k, nout, w_itemsize, target=_BLOCK_TARGET):
    """Largest multiple-of-128 divisor of Nout keeping the (K, tn) weight block small."""
    if nout % 128 != 0 or k * nout * w_itemsize <= target:
        return nout
    for tn in range(nout - 128, 0, -128):
        if nout % tn == 0 and k * tn * w_itemsize <= target:
            return tn
    return 128


# ------------------------------------------------------------------ kernels

def _ln_linear_kernel(x_ref, g_ref, bln_ref, w_ref, b_ref, o_ref, *, eps, activation):
    # LayerNorm (f32) on the row tile, then bf16 MXU matmul with f32 accumulation.
    x = x_ref[...].astype(jnp.float32)
    mu = jnp.mean(x, axis=-1, keepdims=True)
    xc = x - mu
    var = jnp.mean(xc * xc, axis=-1, keepdims=True)
    xn = xc * jax.lax.rsqrt(var + eps)
    xn = xn * g_ref[...].astype(jnp.float32) + bln_ref[...].astype(jnp.float32)
    acc = jnp.dot(xn.astype(jnp.bfloat16), w_ref[...],
                  preferred_element_type=jnp.float32)
    acc = acc + b_ref[...].astype(jnp.float32)
    if activation == "gelu":
        acc = jax.nn.gelu(acc, approximate=True)     # tanh approx (EUP friendly)
    o_ref[...] = acc.astype(o_ref.dtype)


def _linear_residual_kernel(x_ref, w_ref, b_ref, res_ref, s_ref, o_ref):
    # out = residual + drop_path_scale[row] * (x @ w + b), all fused.
    acc = jnp.dot(x_ref[...].astype(jnp.bfloat16), w_ref[...],
                  preferred_element_type=jnp.float32)
    acc = acc + b_ref[...].astype(jnp.float32)
    out = res_ref[...].astype(jnp.float32) + s_ref[...].astype(jnp.float32) * acc
    o_ref[...] = out.astype(o_ref.dtype)


def _attn_kernel(qkv_ref, o_ref, *, num_heads, head_dim, scale):
    # qkv_ref block is (1, N, 3*D) with columns ordered (qkv, head, head_dim),
    # exactly the layout the qkv Linear produces.  Heads are split in-VMEM.
    qkv = qkv_ref[0]                                   # (N, 3*D)
    d_model = num_heads * head_dim
    heads = []
    for h in range(num_heads):
        lo = h * head_dim
        q = qkv[:, lo:lo + head_dim].astype(jnp.bfloat16)
        k = qkv[:, d_model + lo:d_model + lo + head_dim].astype(jnp.bfloat16)
        v = qkv[:, 2 * d_model + lo:2 * d_model + lo + head_dim].astype(jnp.bfloat16)
        s = jax.lax.dot_general(q, k, (((1,), (1,)), ((), ())),
                                preferred_element_type=jnp.float32) * scale   # (N, N)
        m = jnp.max(s, axis=-1, keepdims=True)
        p = jnp.exp(s - m)
        p = p * pl.reciprocal(jnp.sum(p, axis=-1, keepdims=True), approx=True)
        heads.append(jnp.dot(p.astype(jnp.bfloat16), v,
                             preferred_element_type=jnp.float32))             # (N, hd)
    o_ref[0] = jnp.concatenate(heads, axis=-1).astype(o_ref.dtype)            # lane-dense (N, D)


# ------------------------------------------------------------------ wrappers

def _ln_linear(x2d, gamma, beta, w, b, *, eps, activation, out_dtype):
    M, K = x2d.shape
    Nout = w.shape[1]
    tm = _row_tile(M)
    tn = _pick_tn(K, Nout, w.dtype.itemsize)
    return pl.pallas_call(
        partial(_ln_linear_kernel, eps=eps, activation=activation),
        out_shape=jax.ShapeDtypeStruct((M, Nout), out_dtype),
        grid_spec=pltpu.PrefetchScalarGridSpec(
            num_scalar_prefetch=0,
            grid=(pl.cdiv(M, tm), Nout // tn),
            in_specs=[
                pl.BlockSpec((tm, K), lambda i, j: (i, 0)),
                pl.BlockSpec((1, K), lambda i, j: (0, 0)),
                pl.BlockSpec((1, K), lambda i, j: (0, 0)),
                pl.BlockSpec((K, tn), lambda i, j: (0, j)),
                pl.BlockSpec((1, tn), lambda i, j: (0, j)),
            ],
            out_specs=pl.BlockSpec((tm, tn), lambda i, j: (i, j)),
        ),
        compiler_params=_cp(("parallel", "parallel")),
    )(x2d, gamma, beta, w, b.reshape(1, Nout))


def _linear_residual(x2d, w, b, res, scale_rows, *, out_dtype):
    M, K = x2d.shape
    Nout = w.shape[1]
    tm = _row_tile(M)
    tn = _pick_tn(K, Nout, w.dtype.itemsize)
    return pl.pallas_call(
        _linear_residual_kernel,
        out_shape=jax.ShapeDtypeStruct((M, Nout), out_dtype),
        grid_spec=pltpu.PrefetchScalarGridSpec(
            num_scalar_prefetch=0,
            grid=(pl.cdiv(M, tm), Nout // tn),
            in_specs=[
                pl.BlockSpec((tm, K), lambda i, j: (i, 0)),
                pl.BlockSpec((K, tn), lambda i, j: (0, j)),
                pl.BlockSpec((1, tn), lambda i, j: (0, j)),
                pl.BlockSpec((tm, tn), lambda i, j: (i, j)),
                pl.BlockSpec((tm, 1), lambda i, j: (i, 0)),
            ],
            out_specs=pl.BlockSpec((tm, tn), lambda i, j: (i, j)),
        ),
        compiler_params=_cp(("parallel", "parallel")),
        input_output_aliases={3: 0},          # write the result in place of the residual
    )(x2d, w, b.reshape(1, Nout), res, scale_rows)


def _attention(qkv3, *, num_heads, head_dim, scale, out_dtype):
    B, N, threeD = qkv3.shape
    D = num_heads * head_dim
    return pl.pallas_call(
        partial(_attn_kernel, num_heads=num_heads, head_dim=head_dim, scale=scale),
        out_shape=jax.ShapeDtypeStruct((B, N, D), out_dtype),
        grid_spec=pltpu.PrefetchScalarGridSpec(
            num_scalar_prefetch=0,
            grid=(B,),
            in_specs=[pl.BlockSpec((1, N, threeD), lambda b: (b, 0, 0))],
            out_specs=pl.BlockSpec((1, N, D), lambda b: (b, 0, 0)),
        ),
        compiler_params=_cp(("parallel",)),
    )(qkv3)


# ------------------------------------------------------------------ Block forward

@partial(jax.jit, static_argnames=("num_heads", "attn_scale", "eps"))
def _block_forward(x, params, scale1, scale2, *, num_heads, attn_scale, eps):
    B, N, D = x.shape
    hd = D // num_heads
    M = B * N
    x2d = x.reshape(M, D)

    s1 = jnp.repeat(scale1.astype(jnp.float32), N).reshape(M, 1)
    s2 = jnp.repeat(scale2.astype(jnp.float32), N).reshape(M, 1)

    # ---- attention branch: LN1 fused into qkv, residual+DropPath fused into proj
    qkv = _ln_linear(x2d, params["g1"], params["b1"],
                     params["w_qkv"], params["b_qkv"],
                     eps=eps, activation=None, out_dtype=jnp.bfloat16)     # (M, 3D) bf16
    o = _attention(qkv.reshape(B, N, 3 * D),
                   num_heads=num_heads, head_dim=hd,
                   scale=attn_scale, out_dtype=jnp.bfloat16)               # (B, N, D) bf16
    x2d = _linear_residual(o.reshape(M, D), params["w_proj"], params["b_proj"],
                           x2d, s1, out_dtype=x.dtype)                     # (M, D) f32

    # ---- MLP branch: LN2 fused into fc1, residual+DropPath fused into fc2
    h = _ln_linear(x2d, params["g2"], params["b2"],
                   params["w_fc1"], params["b_fc1"],
                   eps=eps, activation="gelu", out_dtype=jnp.bfloat16)     # (M, hidden) bf16
    x2d = _linear_residual(h, params["w_fc2"], params["b_fc2"],
                           x2d, s2, out_dtype=x.dtype)                     # (M, D) f32
    return x2d.reshape(B, N, D)


def _drop_path_scales(batch, drop_prob, training, key):
    """Per-sample scale = mask / keep_prob, matching PyTorch drop_path."""
    if drop_prob == 0.0 or not training:
        return jnp.ones((batch,), jnp.float32)
    if key is None:
        raise ValueError("drop_path with training=True and drop_prob>0 requires a PRNG key")
    keep_prob = 1.0 - drop_prob
    u = jax.random.uniform(key, (batch,), dtype=jnp.float32)
    mask = (u >= jnp.float32(drop_prob)).astype(jnp.float32)   # == floor(keep_prob + u)
    return mask / jnp.float32(keep_prob)


class Block:
    """JAX/Pallas mirror of the PyTorch ViT Block (forward pass only)."""

    def __init__(self, dim, num_heads, mlp_ratio=4.0, qkv_bias=False, qk_scale=None,
                 drop_ratio=0.0, attn_drop_ratio=0.0, drop_path_ratio=0.0, *, key):
        assert dim % num_heads == 0
        self.dim = dim
        self.num_heads = num_heads
        self.attn_scale = float(qk_scale) if qk_scale is not None \
            else float((dim // num_heads) ** -0.5)
        self.drop_path_ratio = float(drop_path_ratio)
        self.training = True
        hidden = int(dim * mlp_ratio)

        ks = jax.random.split(key, 10)

        def w(k, shape, s=0.02):
            # weights stored bf16: MXU-native operand dtype, halves weight DMA bytes
            return (s * jax.random.normal(k, shape, jnp.float32)).astype(jnp.bfloat16)

        self.params = {
            "g1": 1.0 + 0.1 * jax.random.normal(ks[0], (1, dim), jnp.float32),
            "b1": 0.05 * jax.random.normal(ks[1], (1, dim), jnp.float32),
            "w_qkv": w(ks[2], (dim, 3 * dim)),
            "b_qkv": (0.02 * jax.random.normal(ks[3], (3 * dim,), jnp.float32)
                      if qkv_bias else jnp.zeros((3 * dim,), jnp.float32)),
            "w_proj": w(ks[4], (dim, dim)),
            "b_proj": 0.02 * jax.random.normal(ks[5], (dim,), jnp.float32),
            "g2": 1.0 + 0.1 * jax.random.normal(ks[6], (1, dim), jnp.float32),
            "b2": 0.05 * jax.random.normal(ks[7], (1, dim), jnp.float32),
            "w_fc1": w(ks[8], (dim, hidden)),
            "b_fc1": jnp.full((hidden,), 0.01, jnp.float32),
            "w_fc2": w(ks[9], (hidden, dim)),
            "b_fc2": jnp.zeros((dim,), jnp.float32),
        }

    def __call__(self, x, *, rng=None):
        if self.training and self.drop_path_ratio > 0.0:
            if rng is None:
                raise ValueError("training Block with drop_path_ratio>0 needs rng=")
            k1, k2 = jax.random.split(rng)
        else:
            k1 = k2 = None
        s1 = _drop_path_scales(x.shape[0], self.drop_path_ratio, self.training, k1)
        s2 = _drop_path_scales(x.shape[0], self.drop_path_ratio, self.training, k2)
        return _block_forward(x, self.params, s1, s2,
                              num_heads=self.num_heads,
                              attn_scale=self.attn_scale, eps=1e-5)


# ------------------------------------------------------------------ pure-JAX reference
# Mirrors the kernel's mixed-precision strategy (bf16 MXU operands, f32 accum,
# bf16 branch intermediates) so the tolerance can stay tight.

def _block_reference(x, params, s1, s2, *, num_heads, attn_scale, eps):
    f32, bf16 = jnp.float32, jnp.bfloat16
    B, N, D = x.shape
    H = num_heads
    hd = D // H

    def ln(t, g, b):
        t = t.astype(f32)
        mu = t.mean(-1, keepdims=True)
        var = ((t - mu) ** 2).mean(-1, keepdims=True)
        return (t - mu) * jax.lax.rsqrt(var + eps) * g + b

    def mm(a, w, bias):
        return jnp.dot(a.astype(bf16), w.astype(bf16),
                       preferred_element_type=f32) + bias.astype(f32)

    h = ln(x, params["g1"], params["b1"])
    qkv = mm(h, params["w_qkv"], params["b_qkv"]).astype(bf16)
    qkv = qkv.reshape(B, N, 3, H, hd).transpose(2, 0, 3, 1, 4)
    q, k, v = qkv[0], qkv[1], qkv[2]
    s = jnp.einsum("bhqd,bhkd->bhqk", q, k, preferred_element_type=f32) * attn_scale
    p = jax.nn.softmax(s, axis=-1)
    o = jnp.einsum("bhqk,bhkd->bhqd", p.astype(bf16), v, preferred_element_type=f32)
    o = o.transpose(0, 2, 1, 3).reshape(B, N, D).astype(bf16)
    o = mm(o, params["w_proj"], params["b_proj"])
    x = x.astype(f32) + s1[:, None, None] * o

    h = ln(x, params["g2"], params["b2"])
    h = jax.nn.gelu(mm(h, params["w_fc1"], params["b_fc1"]), approximate=True).astype(bf16)
    h = mm(h, params["w_fc2"], params["b_fc2"])
    x = x + s2[:, None, None] * h
    return x


if __name__ == "__main__":
    root = jax.random.PRNGKey(0)
    k_param, k_x, k_dp = jax.random.split(root, 3)

    B, N, D, H = 2, 8, 32, 8
    drop_path_ratio = 0.25

    blk = Block(dim=D, num_heads=H, mlp_ratio=4.0, qkv_bias=False,
                drop_path_ratio=drop_path_ratio, key=k_param)
    x = jax.random.normal(k_x, (B, N, D), jnp.float32)

    # training mode: DropPath active, fused into the residual epilogues
    blk.training = True
    y = jax.block_until_ready(blk(x, rng=k_dp))

    k1, k2 = jax.random.split(k_dp)
    s1 = _drop_path_scales(B, drop_path_ratio, True, k1)
    s2 = _drop_path_scales(B, drop_path_ratio, True, k2)
    ref = _block_reference(x, blk.params, s1, s2, num_heads=H,
                           attn_scale=blk.attn_scale, eps=1e-5)
    assert y.shape == x.shape and y.dtype == x.dtype
    err = float(jnp.max(jnp.abs(y - ref)))
    assert jnp.allclose(y, ref, atol=3e-3, rtol=3e-3), f"max abs err {err}"

    # eval mode: DropPath is the identity
    blk.training = False
    y_eval = jax.block_until_ready(blk(x))
    ones = jnp.ones((B,), jnp.float32)
    ref_eval = _block_reference(x, blk.params, ones, ones, num_heads=H,
                                attn_scale=blk.attn_scale, eps=1e-5)
    err_eval = float(jnp.max(jnp.abs(y_eval - ref_eval)))
    assert jnp.allclose(y_eval, ref_eval, atol=3e-3, rtol=3e-3), f"max abs err {err_eval}"

    print("KERNEL_OK")
</pallas_src>

<mosaic_0001>
module attributes {stable_mosaic.version = 11 : i64} {
  func.func @_ln_linear_kernel(%arg0: i32, %arg1: i32, %arg2: memref<16x32xf32, #tpu.memory_space<vmem>>, %arg3: memref<1x32xf32, #tpu.memory_space<vmem>>, %arg4: memref<1x32xf32, #tpu.memory_space<vmem>>, %arg5: memref<32x96xbf16, #tpu.memory_space<vmem>>, %arg6: memref<1x96xf32, #tpu.memory_space<vmem>>, %arg7: memref<16x96xbf16, #tpu.memory_space<vmem>>) attributes {dimension_semantics = [#tpu.dimension_semantics<parallel>, #tpu.dimension_semantics<parallel>], iteration_bounds = array<i64: 1, 1>, scalar_prefetch = 0 : i64, scratch_operands = 0 : i64, tpu.core_type = #tpu.core_type<tc>, window_params = [{transform_indices = @transform_0, window_bounds = array<i64: 16, 32>}, {pipeline_mode = #tpu.pipeline_mode<synchronous>, transform_indices = @transform_1, window_bounds = array<i64: 1, 32>}, {pipeline_mode = #tpu.pipeline_mode<synchronous>, transform_indices = @transform_2, window_bounds = array<i64: 1, 32>}, {transform_indices = @transform_3, window_bounds = array<i64: 32, 96>}, {transform_indices = @transform_4, window_bounds = array<i64: 1, 96>}, {transform_indices = @transform_5, window_bounds = array<i64: 16, 96>}]} {
    %c0 = arith.constant 0 : index
    %c0_0 = arith.constant 0 : index
    %0 = vector.load %arg2[%c0, %c0_0] : memref<16x32xf32, #tpu.memory_space<vmem>>, vector<16x32xf32>
    %cst = arith.constant dense<0.000000e+00> : vector<16xf32>
    %1 = vector.multi_reduction <add>, %0, %cst [1] : vector<16x32xf32> to vector<16xf32>
    %2 = vector.shape_cast %1 : vector<16xf32> to vector<16x1xf32>
    %cst_1 = arith.constant 3.200000e+01 : f32
    %3 = vector.broadcast %cst_1 : f32 to vector<16x1xf32>
    %4 = arith.divf %2, %3 : vector<16x1xf32>
    %5 = vector.broadcast %4 : vector<16x1xf32> to vector<16x32xf32>
    %6 = arith.subf %0, %5 : vector<16x32xf32>
    %7 = arith.mulf %6, %6 : vector<16x32xf32>
    %cst_2 = arith.constant dense<0.000000e+00> : vector<16xf32>
    %8 = vector.multi_reduction <add>, %7, %cst_2 [1] : vector<16x32xf32> to vector<16xf32>
    %9 = vector.shape_cast %8 : vector<16xf32> to vector<16x1xf32>
    %cst_3 = arith.constant 3.200000e+01 : f32
    %10 = vector.broadcast %cst_3 : f32 to vector<16x1xf32>
    %11 = arith.divf %9, %10 : vector<16x1xf32>
    %cst_4 = arith.constant 9.99999974E-6 : f32
    %12 = vector.broadcast %cst_4 : f32 to vector<16x1xf32>
    %13 = arith.addf %11, %12 : vector<16x1xf32>
    %14 = math.rsqrt %13 : vector<16x1xf32>
    %15 = vector.broadcast %14 : vector<16x1xf32> to vector<16x32xf32>
    %16 = arith.mulf %6, %15 : vector<16x32xf32>
    %c0_5 = arith.constant 0 : index
    %c0_6 = arith.constant 0 : index
    %17 = vector.load %arg3[%c0_5, %c0_6] : memref<1x32xf32, #tpu.memory_space<vmem>>, vector<1x32xf32>
    %18 = vector.broadcast %17 : vector<1x32xf32> to vector<16x32xf32>
    %19 = arith.mulf %16, %18 : vector<16x32xf32>
    %c0_7 = arith.constant 0 : index
    %c0_8 = arith.constant 0 : index
    %20 = vector.load %arg4[%c0_7, %c0_8] : memref<1x32xf32, #tpu.memory_space<vmem>>, vector<1x32xf32>
    %21 = vector.broadcast %20 : vector<1x32xf32> to vector<16x32xf32>
    %22 = arith.addf %19, %21 : vector<16x32xf32>
    %23 = arith.truncf %22 : vector<16x32xf32> to vector<16x32xbf16>
    %c0_9 = arith.constant 0 : index
    %c0_10 = arith.constant 0 : index
    %24 = vector.load %arg5[%c0_9, %c0_10] : memref<32x96xbf16, #tpu.memory_space<vmem>>, vector<32x96xbf16>
    %cst_11 = arith.constant dense<0.000000e+00> : vector<16x96xf32>
    %25 = tpu.matmul %23, %24, %cst_11 {dimension_numbers = #tpu.dot_dimension_numbers<[1], [0], [0], [1], [0, 0, 1, 1], [], []>} : vector<16x32xbf16>, vector<32x96xbf16>, vector<16x96xf32> -> vector<16x96xf32>
    %c0_12 = arith.constant 0 : index
    %c0_13 = arith.constant 0 : index
    %26 = vector.load %arg6[%c0_12, %c0_13] : memref<1x96xf32, #tpu.memory_space<vmem>>, vector<1x96xf32>
    %27 = vector.broadcast %26 : vector<1x96xf32> to vector<16x96xf32>
    %28 = arith.addf %25, %27 : vector<16x96xf32>
    %29 = arith.truncf %28 : vector<16x96xf32> to vector<16x96xbf16>
    %c0_14 = arith.constant 0 : index
    %c0_15 = arith.constant 0 : index
    %30 = vector.load %arg7[%c0_14, %c0_15] : memref<16x96xbf16, #tpu.memory_space<vmem>>, vector<16x96xbf16>
    tpu.vector_store %arg7[%c0_14, %c0_15], %29 {strides = array<i32>} : memref<16x96xbf16, #tpu.memory_space<vmem>>, vector<16x96xbf16>,
    return
  }
  func.func @transform_0(%arg0: i32, %arg1: i32) -> (i32, i32) {
    %c0_i32 = arith.constant 0 : i32
    %c0_i32_0 = arith.constant 0 : i32
    return %arg0, %c0_i32 : i32, i32
  }
  func.func @transform_1(%arg0: i32, %arg1: i32) -> (i32, i32) {
    %c0_i32 = arith.constant 0 : i32
    %c0_i32_0 = arith.constant 0 : i32
    %c0_i32_1 = arith.constant 0 : i32
    return %c0_i32, %c0_i32_0 : i32, i32
  }
  func.func @transform_2(%arg0: i32, %arg1: i32) -> (i32, i32) {
    %c0_i32 = arith.constant 0 : i32
    %c0_i32_0 = arith.constant 0 : i32
    %c0_i32_1 = arith.constant 0 : i32
    return %c0_i32, %c0_i32_0 : i32, i32
  }
  func.func @transform_3(%arg0: i32, %arg1: i32) -> (i32, i32) {
    %c0_i32 = arith.constant 0 : i32
    %c0_i32_0 = arith.constant 0 : i32
    return %c0_i32, %arg1 : i32, i32
  }
  func.func @transform_4(%arg0: i32, %arg1: i32) -> (i32, i32) {
    %c0_i32 = arith.constant 0 : i32
    %c0_i32_0 = arith.constant 0 : i32
    return %c0_i32, %arg1 : i32, i32
  }
  func.func @transform_5(%arg0: i32, %arg1: i32) -> (i32, i32) {
    %c0_i32 = arith.constant 0 : i32
    return %arg0, %arg1 : i32, i32
  }
}

module attributes {stable_mosaic.version = 11 : i64} {
  func.func @_ln_linear_kernel(%arg0: i32, %arg1: i32, %arg2: memref<16x32xf32, #tpu.memory_space<vmem>>, %arg3: memref<1x32xf32, #tpu.memory_space<vmem>>, %arg4: memref<1x32xf32, #tpu.memory_space<vmem>>, %arg5: memref<32x128xbf16, #tpu.memory_space<vmem>>, %arg6: memref<1x128xf32, #tpu.memory_space<vmem>>, %arg7: memref<16x128xbf16, #tpu.memory_space<vmem>>) attributes {dimension_semantics = [#tpu.dimension_semantics<parallel>, #tpu.dimension_semantics<parallel>], iteration_bounds = array<i64: 1, 1>, scalar_prefetch = 0 : i64, scratch_operands = 0 : i64, tpu.core_type = #tpu.core_type<tc>, window_params = [{transform_indices = @transform_0, window_bounds = array<i64: 16, 32>}, {pipeline_mode = #tpu.pipeline_mode<synchronous>, transform_indices = @transform_1, window_bounds = array<i64: 1, 32>}, {pipeline_mode = #tpu.pipeline_mode<synchronous>, transform_indices = @transform_2, window_bounds = array<i64: 1, 32>}, {transform_indices = @transform_3, window_bounds = array<i64: 32, 128>}, {transform_indices = @transform_4, window_bounds = array<i64: 1, 128>}, {transform_indices = @transform_5, window_bounds = array<i64: 16, 128>}]} {
    %c0 = arith.constant 0 : index
    %c0_0 = arith.constant 0 : index
    %0 = vector.load %arg2[%c0, %c0_0] : memref<16x32xf32, #tpu.memory_space<vmem>>, vector<16x32xf32>
    %cst = arith.constant dense<0.000000e+00> : vector<16xf32>
    %1 = vector.multi_reduction <add>, %0, %cst [1] : vector<16x32xf32> to vector<16xf32>
    %2 = vector.shape_cast %1 : vector<16xf32> to vector<16x1xf32>
    %cst_1 = arith.constant 3.200000e+01 : f32
    %3 = vector.broadcast %cst_1 : f32 to vector<16x1xf32>
    %4 = arith.divf %2, %3 : vector<16x1xf32>
    %5 = vector.broadcast %4 : vector<16x1xf32> to vector<16x32xf32>
    %6 = arith.subf %0, %5 : vector<16x32xf32>
    %7 = arith.mulf %6, %6 : vector<16x32xf32>
    %cst_2 = arith.constant dense<0.000000e+00> : vector<16xf32>
    %8 = vector.multi_reduction <add>, %7, %cst_2 [1] : vector<16x32xf32> to vector<16xf32>
    %9 = vector.shape_cast %8 : vector<16xf32> to vector<16x1xf32>
    %cst_3 = arith.constant 3.200000e+01 : f32
    %10 = vector.broadcast %cst_3 : f32 to vector<16x1xf32>
    %11 = arith.divf %9, %10 : vector<16x1xf32>
    %cst_4 = arith.constant 9.99999974E-6 : f32
    %12 = vector.broadcast %cst_4 : f32 to vector<16x1xf32>
    %13 = arith.addf %11, %12 : vector<16x1xf32>
    %14 = math.rsqrt %13 : vector<16x1xf32>
    %15 = vector.broadcast %14 : vector<16x1xf32> to vector<16x32xf32>
    %16 = arith.mulf %6, %15 : vector<16x32xf32>
    %c0_5 = arith.constant 0 : index
    %c0_6 = arith.constant 0 : index
    %17 = vector.load %arg3[%c0_5, %c0_6] : memref<1x32xf32, #tpu.memory_space<vmem>>, vector<1x32xf32>
    %18 = vector.broadcast %17 : vector<1x32xf32> to vector<16x32xf32>
    %19 = arith.mulf %16, %18 : vector<16x32xf32>
    %c0_7 = arith.constant 0 : index
    %c0_8 = arith.constant 0 : index
    %20 = vector.load %arg4[%c0_7, %c0_8] : memref<1x32xf32, #tpu.memory_space<vmem>>, vector<1x32xf32>
    %21 = vector.broadcast %20 : vector<1x32xf32> to vector<16x32xf32>
    %22 = arith.addf %19, %21 : vector<16x32xf32>
    %23 = arith.truncf %22 : vector<16x32xf32> to vector<16x32xbf16>
    %c0_9 = arith.constant 0 : index
    %c0_10 = arith.constant 0 : index
    %24 = vector.load %arg5[%c0_9, %c0_10] : memref<32x128xbf16, #tpu.memory_space<vmem>>, vector<32x128xbf16>
    %cst_11 = arith.constant dense<0.000000e+00> : vector<16x128xf32>
    %25 = tpu.matmul %23, %24, %cst_11 {dimension_numbers = #tpu.dot_dimension_numbers<[1], [0], [0], [1], [0, 0, 1, 1], [], []>} : vector<16x32xbf16>, vector<32x128xbf16>, vector<16x128xf32> -> vector<16x128xf32>
    %c0_12 = arith.constant 0 : index
    %c0_13 = arith.constant 0 : index
    %26 = vector.load %arg6[%c0_12, %c0_13] : memref<1x128xf32, #tpu.memory_space<vmem>>, vector<1x128xf32>
    %27 = vector.broadcast %26 : vector<1x128xf32> to vector<16x128xf32>
    %28 = arith.addf %25, %27 : vector<16x128xf32>
    %29 = arith.mulf %28, %28 : vector<16x128xf32>
    %30 = arith.mulf %28, %29 : vector<16x128xf32>
    %cst_14 = arith.constant 4.471500e-02 : f32
    %31 = vector.broadcast %cst_14 : f32 to vector<16x128xf32>
    %32 = arith.mulf %31, %30 : vector<16x128xf32>
    %33 = arith.addf %28, %32 : vector<16x128xf32>
    %cst_15 = arith.constant 0.797884583 : f32
    %34 = vector.broadcast %cst_15 : f32 to vector<16x128xf32>
    %35 = arith.mulf %34, %33 : vector<16x128xf32>
    %36 = math.tanh %35 : vector<16x128xf32>
    %cst_16 = arith.constant 1.000000e+00 : f32
    %37 = vector.broadcast %cst_16 : f32 to vector<16x128xf32>
    %38 = arith.addf %37, %36 : vector<16x128xf32>
    %cst_17 = arith.constant 5.000000e-01 : f32
    %39 = vector.broadcast %cst_17 : f32 to vector<16x128xf32>
    %40 = arith.mulf %39, %38 : vector<16x128xf32>
    %41 = arith.mulf %28, %40 : vector<16x128xf32>
    %42 = arith.truncf %41 : vector<16x128xf32> to vector<16x128xbf16>
    %c0_18 = arith.constant 0 : index
    %c0_19 = arith.constant 0 : index
    %43 = vector.load %arg7[%c0_18, %c0_19] : memref<16x128xbf16, #tpu.memory_space<vmem>>, vector<16x128xbf16>
    tpu.vector_store %arg7[%c0_18, %c0_19], %42 {strides = array<i32>} : memref<16x128xbf16, #tpu.memory_space<vmem>>, vector<16x128xbf16>,
    return
  }
  func.func @transform_0(%arg0: i32, %arg1: i32) -> (i32, i32) {
    %c0_i32 = arith.constant 0 : i32
    %c0_i32_0 = arith.constant 0 : i32
    return %arg0, %c0_i32 : i32, i32
  }
  func.func @transform_1(%arg0: i32, %arg1: i32) -> (i32, i32) {
    %c0_i32 = arith.constant 0 : i32
    %c0_i32_0 = arith.constant 0 : i32
    %c0_i32_1 = arith.constant 0 : i32
    return %c0_i32, %c0_i32_0 : i32, i32
  }
  func.func @transform_2(%arg0: i32, %arg1: i32) -> (i32, i32) {
    %c0_i32 = arith.constant 0 : i32
    %c0_i32_0 = arith.constant 0 : i32
    %c0_i32_1 = arith.constant 0 : i32
    return %c0_i32, %c0_i32_0 : i32, i32
  }
  func.func @transform_3(%arg0: i32, %arg1: i32) -> (i32, i32) {
    %c0_i32 = arith.constant 0 : i32
    %c0_i32_0 = arith.constant 0 : i32
    return %c0_i32, %arg1 : i32, i32
  }
  func.func @transform_4(%arg0: i32, %arg1: i32) -> (i32, i32) {
    %c0_i32 = arith.constant 0 : i32
    %c0_i32_0 = arith.constant 0 : i32
    return %c0_i32, %arg1 : i32, i32
  }
  func.func @transform_5(%arg0: i32, %arg1: i32) -> (i32, i32) {
    %c0_i32 = arith.constant 0 : i32
    return %arg0, %arg1 : i32, i32
  }
}

module attributes {stable_mosaic.version = 11 : i64} {
  func.func @_linear_residual_kernel(%arg0: i32, %arg1: i32, %arg2: memref<16x32xbf16, #tpu.memory_space<vmem>>, %arg3: memref<32x32xbf16, #tpu.memory_space<vmem>>, %arg4: memref<1x32xf32, #tpu.memory_space<vmem>>, %arg5: memref<16x32xf32, #tpu.memory_space<vmem>>, %arg6: memref<16x1xf32, #tpu.memory_space<vmem>>, %arg7: memref<16x32xf32, #tpu.memory_space<vmem>>) attributes {dimension_semantics = [#tpu.dimension_semantics<parallel>, #tpu.dimension_semantics<parallel>], iteration_bounds = array<i64: 1, 1>, scalar_prefetch = 0 : i64, scratch_operands = 0 : i64, tpu.core_type = #tpu.core_type<tc>, window_params = [{transform_indices = @transform_0, window_bounds = array<i64: 16, 32>}, {transform_indices = @transform_1, window_bounds = array<i64: 32, 32>}, {transform_indices = @transform_2, window_bounds = array<i64: 1, 32>}, {transform_indices = @transform_3, window_bounds = array<i64: 16, 32>}, {transform_indices = @transform_4, window_bounds = array<i64: 16, 1>}, {transform_indices = @transform_5, window_bounds = array<i64: 16, 32>}]} {
    %c0 = arith.constant 0 : index
    %c0_0 = arith.constant 0 : index
    %0 = vector.load %arg2[%c0, %c0_0] : memref<16x32xbf16, #tpu.memory_space<vmem>>, vector<16x32xbf16>
    %c0_1 = arith.constant 0 : index
    %c0_2 = arith.constant 0 : index
    %1 = vector.load %arg3[%c0_1, %c0_2] : memref<32x32xbf16, #tpu.memory_space<vmem>>, vector<32x32xbf16>
    %cst = arith.constant dense<0.000000e+00> : vector<16x32xf32>
    %2 = tpu.matmul %0, %1, %cst {dimension_numbers = #tpu.dot_dimension_numbers<[1], [0], [0], [1], [0, 0, 1, 1], [], []>} : vector<16x32xbf16>, vector<32x32xbf16>, vector<16x32xf32> -> vector<16x32xf32>
    %c0_3 = arith.constant 0 : index
    %c0_4 = arith.constant 0 : index
    %3 = vector.load %arg4[%c0_3, %c0_4] : memref<1x32xf32, #tpu.memory_space<vmem>>, vector<1x32xf32>
    %4 = vector.broadcast %3 : vector<1x32xf32> to vector<16x32xf32>
    %5 = arith.addf %2, %4 : vector<16x32xf32>
    %c0_5 = arith.constant 0 : index
    %c0_6 = arith.constant 0 : index
    %6 = vector.load %arg5[%c0_5, %c0_6] : memref<16x32xf32, #tpu.memory_space<vmem>>, vector<16x32xf32>
    %c0_7 = arith.constant 0 : index
    %c0_8 = arith.constant 0 : index
    %7 = vector.load %arg6[%c0_7, %c0_8] : memref<16x1xf32, #tpu.memory_space<vmem>>, vector<16x1xf32>
    %8 = vector.broadcast %7 : vector<16x1xf32> to vector<16x32xf32>
    %9 = arith.mulf %8, %5 : vector<16x32xf32>
    %10 = arith.addf %6, %9 : vector<16x32xf32>
    %c0_9 = arith.constant 0 : index
    %c0_10 = arith.constant 0 : index
    %11 = vector.load %arg7[%c0_9, %c0_10] : memref<16x32xf32, #tpu.memory_space<vmem>>, vector<16x32xf32>
    tpu.vector_store %arg7[%c0_9, %c0_10], %10 {strides = array<i32>} : memref<16x32xf32, #tpu.memory_space<vmem>>, vector<16x32xf32>,
    return
  }
  func.func @transform_0(%arg0: i32, %arg1: i32) -> (i32, i32) {
    %c0_i32 = arith.constant 0 : i32
    %c0_i32_0 = arith.constant 0 : i32
    return %arg0, %c0_i32 : i32, i32
  }
  func.func @transform_1(%arg0: i32, %arg1: i32) -> (i32, i32) {
    %c0_i32 = arith.constant 0 : i32
    %c0_i32_0 = arith.constant 0 : i32
    return %c0_i32, %arg1 : i32, i32
  }
  func.func @transform_2(%arg0: i32, %arg1: i32) -> (i32, i32) {
    %c0_i32 = arith.constant 0 : i32
    %c0_i32_0 = arith.constant 0 : i32
    return %c0_i32, %arg1 : i32, i32
  }
  func.func @transform_3(%arg0: i32, %arg1: i32) -> (i32, i32) {
    %c0_i32 = arith.constant 0 : i32
    return %arg0, %arg1 : i32, i32
  }
  func.func @transform_4(%arg0: i32, %arg1: i32) -> (i32, i32) {
    %c0_i32 = arith.constant 0 : i32
    %c0_i32_0 = arith.constant 0 : i32
    return %arg0, %c0_i32 : i32, i32
  }
  func.func @transform_5(%arg0: i32, %arg1: i32) -> (i32, i32) {
    %c0_i32 = arith.constant 0 : i32
    return %arg0, %arg1 : i32, i32
  }
}

module attributes {stable_mosaic.version = 11 : i64} {
  func.func @_attn_kernel(%arg0: i32, %arg1: memref<1x8x96xbf16, #tpu.memory_space<vmem>>, %arg2: memref<1x8x32xbf16, #tpu.memory_space<vmem>>) attributes {dimension_semantics = [#tpu.dimension_semantics<parallel>], iteration_bounds = array<i64: 2>, scalar_prefetch = 0 : i64, scratch_operands = 0 : i64, tpu.core_type = #tpu.core_type<tc>, window_params = [{transform_indices = @transform_0, window_bounds = array<i64: 1, 8, 96>}, {transform_indices = @transform_1, window_bounds = array<i64: 1, 8, 32>}]} {
    %c0 = arith.constant 0 : index
    %c0_0 = arith.constant 0 : index
    %c0_1 = arith.constant 0 : index
    %0 = vector.load %arg1[%c0, %c0_0, %c0_1] : memref<1x8x96xbf16, #tpu.memory_space<vmem>>, vector<1x8x96xbf16>
    %1 = vector.shape_cast %0 : vector<1x8x96xbf16> to vector<8x96xbf16>
    %2 = vector.extract_strided_slice %1 {offsets = [0, 0], sizes = [8, 4], strides = [1, 1]} : vector<8x96xbf16> to vector<8x4xbf16>
    %3 = vector.extract_strided_slice %1 {offsets = [0, 32], sizes = [8, 4], strides = [1, 1]} : vector<8x96xbf16> to vector<8x4xbf16>
    %4 = vector.extract_strided_slice %1 {offsets = [0, 64], sizes = [8, 4], strides = [1, 1]} : vector<8x96xbf16> to vector<8x4xbf16>
    %cst = arith.constant dense<0.000000e+00> : vector<8x8xf32>
    %5 = tpu.matmul %2, %3, %cst {dimension_numbers = #tpu.dot_dimension_numbers<[1], [1], [0], [0], [0, 0, 1, 0], [], []>} : vector<8x4xbf16>, vector<8x4xbf16>, vector<8x8xf32> -> vector<8x8xf32>
    %cst_2 = arith.constant 5.000000e-01 : f32
    %6 = vector.broadcast %cst_2 : f32 to vector<8x8xf32>
    %7 = arith.mulf %5, %6 : vector<8x8xf32>
    %cst_3 = arith.constant dense<0xFF800000> : vector<8xf32>
    %8 = vector.multi_reduction <maximumf>, %7, %cst_3 [1] : vector<8x8xf32> to vector<8xf32>
    %9 = vector.shape_cast %8 : vector<8xf32> to vector<8x1xf32>
    %10 = vector.broadcast %9 : vector<8x1xf32> to vector<8x8xf32>
    %11 = arith.subf %7, %10 : vector<8x8xf32>
    %12 = math.exp %11 : vector<8x8xf32>
    %cst_4 = arith.constant dense<0.000000e+00> : vector<8xf32>
    %13 = vector.multi_reduction <add>, %12, %cst_4 [1] : vector<8x8xf32> to vector<8xf32>
    %14 = vector.shape_cast %13 : vector<8xf32> to vector<8x1xf32>
    %15 = tpu.reciprocal %14 {approx = true} : vector<8x1xf32> -> vector<8x1xf32>
    %16 = vector.broadcast %15 : vector<8x1xf32> to vector<8x8xf32>
    %17 = arith.mulf %12, %16 : vector<8x8xf32>
    %18 = arith.truncf %17 : vector<8x8xf32> to vector<8x8xbf16>
    %cst_5 = arith.constant dense<0.000000e+00> : vector<8x4xf32>
    %19 = tpu.matmul %18, %4, %cst_5 {dimension_numbers = #tpu.dot_dimension_numbers<[1], [0], [0], [1], [0, 0, 1, 1], [], []>} : vector<8x8xbf16>, vector<8x4xbf16>, vector<8x4xf32> -> vector<8x4xf32>
    %20 = vector.extract_strided_slice %1 {offsets = [0, 4], sizes = [8, 4], strides = [1, 1]} : vector<8x96xbf16> to vector<8x4xbf16>
    %21 = vector.extract_strided_slice %1 {offsets = [0, 36], sizes = [8, 4], strides = [1, 1]} : vector<8x96xbf16> to vector<8x4xbf16>
    %22 = vector.extract_strided_slice %1 {offsets = [0, 68], sizes = [8, 4], strides = [1, 1]} : vector<8x96xbf16> to vector<8x4xbf16>
    %cst_6 = arith.constant dense<0.000000e+00> : vector<8x8xf32>
    %23 = tpu.matmul %20, %21, %cst_6 {dimension_numbers = #tpu.dot_dimension_numbers<[1], [1], [0], [0], [0, 0, 1, 0], [], []>} : vector<8x4xbf16>, vector<8x4xbf16>, vector<8x8xf32> -> vector<8x8xf32>
    %cst_7 = arith.constant 5.000000e-01 : f32
    %24 = vector.broadcast %cst_7 : f32 to vector<8x8xf32>
    %25 = arith.mulf %23, %24 : vector<8x8xf32>
    %cst_8 = arith.constant dense<0xFF800000> : vector<8xf32>
    %26 = vector.multi_reduction <maximumf>, %25, %cst_8 [1] : vector<8x8xf32> to vector<8xf32>
    %27 = vector.shape_cast %26 : vector<8xf32> to vector<8x1xf32>
    %28 = vector.broadcast %27 : vector<8x1xf32> to vector<8x8xf32>
    %29 = arith.subf %25, %28 : vector<8x8xf32>
    %30 = math.exp %29 : vector<8x8xf32>
    %cst_9 = arith.constant dense<0.000000e+00> : vector<8xf32>
    %31 = vector.multi_reduction <add>, %30, %cst_9 [1] : vector<8x8xf32> to vector<8xf32>
    %32 = vector.shape_cast %31 : vector<8xf32> to vector<8x1xf32>
    %33 = tpu.reciprocal %32 {approx = true} : vector<8x1xf32> -> vector<8x1xf32>
    %34 = vector.broadcast %33 : vector<8x1xf32> to vector<8x8xf32>
    %35 = arith.mulf %30, %34 : vector<8x8xf32>
    %36 = arith.truncf %35 : vector<8x8xf32> to vector<8x8xbf16>
    %cst_10 = arith.constant dense<0.000000e+00> : vector<8x4xf32>
    %37 = tpu.matmul %36, %22, %cst_10 {dimension_numbers = #tpu.dot_dimension_numbers<[1], [0], [0], [1], [0, 0, 1, 1], [], []>} : vector<8x8xbf16>, vector<8x4xbf16>, vector<8x4xf32> -> vector<8x4xf32>
    %38 = vector.extract_strided_slice %1 {offsets = [0, 8], sizes = [8, 4], strides = [1, 1]} : vector<8x96xbf16> to vector<8x4xbf16>
    %39 = vector.extract_strided_slice %1 {offsets = [0, 40], sizes = [8, 4], strides = [1, 1]} : vector<8x96xbf16> to vector<8x4xbf16>
    %40 = vector.extract_strided_slice %1 {offsets = [0, 72], sizes = [8, 4], strides = [1, 1]} : vector<8x96xbf16> to vector<8x4xbf16>
    %cst_11 = arith.constant dense<0.000000e+00> : vector<8x8xf32>
    %41 = tpu.matmul %38, %39, %cst_11 {dimension_numbers = #tpu.dot_dimension_numbers<[1], [1], [0], [0], [0, 0, 1, 0], [], []>} : vector<8x4xbf16>, vector<8x4xbf16>, vector<8x8xf32> -> vector<8x8xf32>
    %cst_12 = arith.constant 5.000000e-01 : f32
    %42 = vector.broadcast %cst_12 : f32 to vector<8x8xf32>
    %43 = arith.mulf %41, %42 : vector<8x8xf32>
    %cst_13 = arith.constant dense<0xFF800000> : vector<8xf32>
    %44 = vector.multi_reduction <maximumf>, %43, %cst_13 [1] : vector<8x8xf32> to vector<8xf32>
    %45 = vector.shape_cast %44 : vector<8xf32> to vector<8x1xf32>
    %46 = vector.broadcast %45 : vector<8x1xf32> to vector<8x8xf32>
    %47 = arith.subf %43, %46 : vector<8x8xf32>
    %48 = math.exp %47 : vector<8x8xf32>
    %cst_14 = arith.constant dense<0.000000e+00> : vector<8xf32>
    %49 = vector.multi_reduction <add>, %48, %cst_14 [1] : vector<8x8xf32> to vector<8xf32>
    %50 = vector.shape_cast %49 : vector<8xf32> to vector<8x1xf32>
    %51 = tpu.reciprocal %50 {approx = true} : vector<8x1xf32> -> vector<8x1xf32>
    %52 = vector.broadcast %51 : vector<8x1xf32> to vector<8x8xf32>
    %53 = arith.mulf %48, %52 : vector<8x8xf32>
    %54 = arith.truncf %53 : vector<8x8xf32> to vector<8x8xbf16>
    %cst_15 = arith.constant dense<0.000000e+00> : vector<8x4xf32>
    %55 = tpu.matmul %54, %40, %cst_15 {dimension_numbers = #tpu.dot_dimension_numbers<[1], [0], [0], [1], [0, 0, 1, 1], [], []>} : vector<8x8xbf16>, vector<8x4xbf16>, vector<8x4xf32> -> vector<8x4xf32>
    %56 = vector.extract_strided_slice %1 {offsets = [0, 12], sizes = [8, 4], strides = [1, 1]} : vector<8x96xbf16> to vector<8x4xbf16>
    %57 = vector.extract_strided_slice %1 {offsets = [0, 44], sizes = [8, 4], strides = [1, 1]} : vector<8x96xbf16> to vector<8x4xbf16>
    %58 = vector.extract_strided_slice %1 {offsets = [0, 76], sizes = [8, 4], strides = [1, 1]} : vector<8x96xbf16> to vector<8x4xbf16>
    %cst_16 = arith.constant dense<0.000000e+00> : vector<8x8xf32>
    %59 = tpu.matmul %56, %57, %cst_16 {dimension_numbers = #tpu.dot_dimension_numbers<[1], [1], [0], [0], [0, 0, 1, 0], [], []>} : vector<8x4xbf16>, vector<8x4xbf16>, vector<8x8xf32> -> vector<8x8xf32>
    %cst_17 = arith.constant 5.000000e-01 : f32
    %60 = vector.broadcast %cst_17 : f32 to vector<8x8xf32>
    %61 = arith.mulf %59, %60 : vector<8x8xf32>
    %cst_18 = arith.constant dense<0xFF800000> : vector<8xf32>
    %62 = vector.multi_reduction <maximumf>, %61, %cst_18 [1] : vector<8x8xf32> to vector<8xf32>
    %63 = vector.shape_cast %62 : vector<8xf32> to vector<8x1xf32>
    %64 = vector.broadcast %63 : vector<8x1xf32> to vector<8x8xf32>
    %65 = arith.subf %61, %64 : vector<8x8xf32>
    %66 = math.exp %65 : vector<8x8xf32>
    %cst_19 = arith.constant dense<0.000000e+00> : vector<8xf32>
    %67 = vector.multi_reduction <add>, %66, %cst_19 [1] : vector<8x8xf32> to vector<8xf32>
    %68 = vector.shape_cast %67 : vector<8xf32> to vector<8x1xf32>
    %69 = tpu.reciprocal %68 {approx = true} : vector<8x1xf32> -> vector<8x1xf32>
    %70 = vector.broadcast %69 : vector<8x1xf32> to vector<8x8xf32>
    %71 = arith.mulf %66, %70 : vector<8x8xf32>
    %72 = arith.truncf %71 : vector<8x8xf32> to vector<8x8xbf16>
    %cst_20 = arith.constant dense<0.000000e+00> : vector<8x4xf32>
    %73 = tpu.matmul %72, %58, %cst_20 {dimension_numbers = #tpu.dot_dimension_numbers<[1], [0], [0], [1], [0, 0, 1, 1], [], []>} : vector<8x8xbf16>, vector<8x4xbf16>, vector<8x4xf32> -> vector<8x4xf32>
    %74 = vector.extract_strided_slice %1 {offsets = [0, 16], sizes = [8, 4], strides = [1, 1]} : vector<8x96xbf16> to vector<8x4xbf16>
    %75 = vector.extract_strided_slice %1 {offsets = [0, 48], sizes = [8, 4], strides = [1, 1]} : vector<8x96xbf16> to vector<8x4xbf16>
    %76 = vector.extract_strided_slice %1 {offsets = [0, 80], sizes = [8, 4], strides = [1, 1]} : vector<8x96xbf16> to vector<8x4xbf16>
    %cst_21 = arith.constant dense<0.000000e+00> : vector<8x8xf32>
    %77 = tpu.matmul %74, %75, %cst_21 {dimension_numbers = #tpu.dot_dimension_numbers<[1], [1], [0], [0], [0, 0, 1, 0], [], []>} : vector<8x4xbf16>, vector<8x4xbf16>, vector<8x8xf32> -> vector<8x8xf32>
    %cst_22 = arith.constant 5.000000e-01 : f32
    %78 = vector.broadcast %cst_22 : f32 to vector<8x8xf32>
    %79 = arith.mulf %77, %78 : vector<8x8xf32>
    %cst_23 = arith.constant dense<0xFF800000> : vector<8xf32>
    %80 = vector.multi_reduction <maximumf>, %79, %cst_23 [1] : vector<8x8xf32> to vector<8xf32>
    %81 = vector.shape_cast %80 : vector<8xf32> to vector<8x1xf32>
    %82 = vector.broadcast %81 : vector<8x1xf32> to vector<8x8xf32>
    %83 = arith.subf %79, %82 : vector<8x8xf32>
    %84 = math.exp %83 : vector<8x8xf32>
    %cst_24 = arith.constant dense<0.000000e+00> : vector<8xf32>
    %85 = vector.multi_reduction <add>, %84, %cst_24 [1] : vector<8x8xf32> to vector<8xf32>
    %86 = vector.shape_cast %85 : vector<8xf32> to vector<8x1xf32>
    %87 = tpu.reciprocal %86 {approx = true} : vector<8x1xf32> -> vector<8x1xf32>
    %88 = vector.broadcast %87 : vector<8x1xf32> to vector<8x8xf32>
    %89 = arith.mulf %84, %88 : vector<8x8xf32>
    %90 = arith.truncf %89 : vector<8x8xf32> to vector<8x8xbf16>
    %cst_25 = arith.constant dense<0.000000e+00> : vector<8x4xf32>
    %91 = tpu.matmul %90, %76, %cst_25 {dimension_numbers = #tpu.dot_dimension_numbers<[1], [0], [0], [1], [0, 0, 1, 1], [], []>} : vector<8x8xbf16>, vector<8x4xbf16>, vector<8x4xf32> -> vector<8x4xf32>
    %92 = vector.extract_strided_slice %1 {offsets = [0, 20], sizes = [8, 4], strides = [1, 1]} : vector<8x96xbf16> to vector<8x4xbf16>
    %93 = vector.extract_strided_slice %1 {offsets = [0, 52], sizes = [8, 4], strides = [1, 1]} : vector<8x96xbf16> to vector<8x4xbf16>
    %94 = vector.extract_strided_slice %1 {offsets = [0, 84], sizes = [8, 4], strides = [1, 1]} : vector<8x96xbf16> to vector<8x4xbf16>
    %cst_26 = arith.constant dense<0.000000e+00> : vector<8x8xf32>
    %95 = tpu.matmul %92, %93, %cst_26 {dimension_numbers = #tpu.dot_dimension_numbers<[1], [1], [0], [0], [0, 0, 1, 0], [], []>} : vector<8x4xbf16>, vector<8x4xbf16>, vector<8x8xf32> -> vector<8x8xf32>
    %cst_27 = arith.constant 5.000000e-01 : f32
    %96 = vector.broadcast %cst_27 : f32 to vector<8x8xf32>
    %97 = arith.mulf %95, %96 : vector<8x8xf32>
    %cst_28 = arith.constant dense<0xFF800000> : vector<8xf32>
    %98 = vector.multi_reduction <maximumf>, %97, %cst_28 [1] : vector<8x8xf32> to vector<8xf32>
    %99 = vector.shape_cast %98 : vector<8xf32> to vector<8x1xf32>
    %100 = vector.broadcast %99 : vector<8x1xf32> to vector<8x8xf32>
    %101 = arith.subf %97, %100 : vector<8x8xf32>
    %102 = math.exp %101 : vector<8x8xf32>
    %cst_29 = arith.constant dense<0.000000e+00> : vector<8xf32>
    %103 = vector.multi_reduction <add>, %102, %cst_29 [1] : vector<8x8xf32> to vector<8xf32>
    %104 = vector.shape_cast %103 : vector<8xf32> to vector<8x1xf32>
    %105 = tpu.reciprocal %104 {approx = true} : vector<8x1xf32> -> vector<8x1xf32>
    %106 = vector.broadcast %105 : vector<8x1xf32> to vector<8x8xf32>
    %107 = arith.mulf %102, %106 : vector<8x8xf32>
    %108 = arith.truncf %107 : vector<8x8xf32> to vector<8x8xbf16>
    %cst_30 = arith.constant dense<0.000000e+00> : vector<8x4xf32>
    %109 = tpu.matmul %108, %94, %cst_30 {dimension_numbers = #tpu.dot_dimension_numbers<[1], [0], [0], [1], [0, 0, 1, 1], [], []>} : vector<8x8xbf16>, vector<8x4xbf16>, vector<8x4xf32> -> vector<8x4xf32>
    %110 = vector.extract_strided_slice %1 {offsets = [0, 24], sizes = [8, 4], strides = [1, 1]} : vector<8x96xbf16> to vector<8x4xbf16>
    %111 = vector.extract_strided_slice %1 {offsets = [0, 56], sizes = [8, 4], strides = [1, 1]} : vector<8x96xbf16> to vector<8x4xbf16>
    %112 = vector.extract_strided_slice %1 {offsets = [0, 88], sizes = [8, 4], strides = [1, 1]} : vector<8x96xbf16> to vector<8x4xbf16>
    %cst_31 = arith.constant dense<0.000000e+00> : vector<8x8xf32>
    %113 = tpu.matmul %110, %111, %cst_31 {dimension_numbers = #tpu.dot_dimension_numbers<[1], [1], [0], [0], [0, 0, 1, 0], [], []>} : vector<8x4xbf16>, vector<8x4xbf16>, vector<8x8xf32> -> vector<8x8xf32>
    %cst_32 = arith.constant 5.000000e-01 : f32
    %114 = vector.broadcast %cst_32 : f32 to vector<8x8xf32>
    %115 = arith.mulf %113, %114 : vector<8x8xf32>
    %cst_33 = arith.constant dense<0xFF800000> : vector<8xf32>
    %116 = vector.multi_reduction <maximumf>, %115, %cst_33 [1] : vector<8x8xf32> to vector<8xf32>
    %117 = vector.shape_cast %116 : vector<8xf32> to vector<8x1xf32>
    %118 = vector.broadcast %117 : vector<8x1xf32> to vector<8x8xf32>
    %119 = arith.subf %115, %118 : vector<8x8xf32>
    %120 = math.exp %119 : vector<8x8xf32>
    %cst_34 = arith.constant dense<0.000000e+00> : vector<8xf32>
    %121 = vector.multi_reduction <add>, %120, %cst_34 [1] : vector<8x8xf32> to vector<8xf32>
    %122 = vector.shape_cast %121 : vector<8xf32> to vector<8x1xf32>
    %123 = tpu.reciprocal %122 {approx = true} : vector<8x1xf32> -> vector<8x1xf32>
    %124 = vector.broadcast %123 : vector<8x1xf32> to vector<8x8xf32>
    %125 = arith.mulf %120, %124 : vector<8x8xf32>
    %126 = arith.truncf %125 : vector<8x8xf32> to vector<8x8xbf16>
    %cst_35 = arith.constant dense<0.000000e+00> : vector<8x4xf32>
    %127 = tpu.matmul %126, %112, %cst_35 {dimension_numbers = #tpu.dot_dimension_numbers<[1], [0], [0], [1], [0, 0, 1, 1], [], []>} : vector<8x8xbf16>, vector<8x4xbf16>, vector<8x4xf32> -> vector<8x4xf32>
    %128 = vector.extract_strided_slice %1 {offsets = [0, 28], sizes = [8, 4], strides = [1, 1]} : vector<8x96xbf16> to vector<8x4xbf16>
    %129 = vector.extract_strided_slice %1 {offsets = [0, 60], sizes = [8, 4], strides = [1, 1]} : vector<8x96xbf16> to vector<8x4xbf16>
    %130 = vector.extract_strided_slice %1 {offsets = [0, 92], sizes = [8, 4], strides = [1, 1]} : vector<8x96xbf16> to vector<8x4xbf16>
    %cst_36 = arith.constant dense<0.000000e+00> : vector<8x8xf32>
    %131 = tpu.matmul %128, %129, %cst_36 {dimension_numbers = #tpu.dot_dimension_numbers<[1], [1], [0], [0], [0, 0, 1, 0], [], []>} : vector<8x4xbf16>, vector<8x4xbf16>, vector<8x8xf32> -> vector<8x8xf32>
    %cst_37 = arith.constant 5.000000e-01 : f32
    %132 = vector.broadcast %cst_37 : f32 to vector<8x8xf32>
    %133 = arith.mulf %131, %132 : vector<8x8xf32>
    %cst_38 = arith.constant dense<0xFF800000> : vector<8xf32>
    %134 = vector.multi_reduction <maximumf>, %133, %cst_38 [1] : vector<8x8xf32> to vector<8xf32>
    %135 = vector.shape_cast %134 : vector<8xf32> to vector<8x1xf32>
    %136 = vector.broadcast %135 : vector<8x1xf32> to vector<8x8xf32>
    %137 = arith.subf %133, %136 : vector<8x8xf32>
    %138 = math.exp %137 : vector<8x8xf32>
    %cst_39 = arith.constant dense<0.000000e+00> : vector<8xf32>
    %139 = vector.multi_reduction <add>, %138, %cst_39 [1] : vector<8x8xf32> to vector<8xf32>
    %140 = vector.shape_cast %139 : vector<8xf32> to vector<8x1xf32>
    %141 = tpu.reciprocal %140 {approx = true} : vector<8x1xf32> -> vector<8x1xf32>
    %142 = vector.broadcast %141 : vector<8x1xf32> to vector<8x8xf32>
    %143 = arith.mulf %138, %142 : vector<8x8xf32>
    %144 = arith.truncf %143 : vector<8x8xf32> to vector<8x8xbf16>
    %cst_40 = arith.constant dense<0.000000e+00> : vector<8x4xf32>
    %145 = tpu.matmul %144, %130, %cst_40 {dimension_numbers = #tpu.dot_dimension_numbers<[1], [0], [0], [1], [0, 0, 1, 1], [], []>} : vector<8x8xbf16>, vector<8x4xbf16>, vector<8x4xf32> -> vector<8x4xf32>
    %146 = tpu.concatenate %19, %37, %55, %73, %91, %109, %127, %145 in 1 : vector<8x4xf32>, vector<8x4xf32>, vector<8x4xf32>, vector<8x4xf32>, vector<8x4xf32>, vector<8x4xf32>, vector<8x4xf32>, vector<8x4xf32> -> vector<8x32xf32>
    %147 = arith.truncf %146 : vector<8x32xf32> to vector<8x32xbf16>
    %c0_41 = arith.constant 0 : index
    %c0_42 = arith.constant 0 : index
    %c0_43 = arith.constant 0 : index
    %148 = vector.load %arg2[%c0_41, %c0_42, %c0_43] : memref<1x8x32xbf16, #tpu.memory_space<vmem>>, vector<1x8x32xbf16>
    %149 = vector.shape_cast %148 : vector<1x8x32xbf16> to vector<8x32xbf16>
    %150 = vector.shape_cast %147 : vector<8x32xbf16> to vector<1x8x32xbf16>
    tpu.vector_store %arg2[%c0_41, %c0_42, %c0_43], %150 {strides = array<i32>} : memref<1x8x32xbf16, #tpu.memory_space<vmem>>, vector<1x8x32xbf16>,
    return
  }
  func.func @transform_0(%arg0: i32) -> (i32, i32, i32) {
    %c0_i32 = arith.constant 0 : i32
    %c0_i32_0 = arith.constant 0 : i32
    %c0_i32_1 = arith.constant 0 : i32
    return %arg0, %c0_i32, %c0_i32_0 : i32, i32, i32
  }
  func.func @transform_1(%arg0: i32) -> (i32, i32, i32) {
    %c0_i32 = arith.constant 0 : i32
    %c0_i32_0 = arith.constant 0 : i32
    %c0_i32_1 = arith.constant 0 : i32
    return %arg0, %c0_i32, %c0_i32_0 : i32, i32, i32
  }
}

module attributes {stable_mosaic.version = 11 : i64} {
  func.func @_linear_residual_kernel(%arg0: i32, %arg1: i32, %arg2: memref<16x128xbf16, #tpu.memory_space<vmem>>, %arg3: memref<128x32xbf16, #tpu.memory_space<vmem>>, %arg4: memref<1x32xf32, #tpu.memory_space<vmem>>, %arg5: memref<16x32xf32, #tpu.memory_space<vmem>>, %arg6: memref<16x1xf32, #tpu.memory_space<vmem>>, %arg7: memref<16x32xf32, #tpu.memory_space<vmem>>) attributes {dimension_semantics = [#tpu.dimension_semantics<parallel>, #tpu.dimension_semantics<parallel>], iteration_bounds = array<i64: 1, 1>, scalar_prefetch = 0 : i64, scratch_operands = 0 : i64, tpu.core_type = #tpu.core_type<tc>, window_params = [{transform_indices = @transform_0, window_bounds = array<i64: 16, 128>}, {transform_indices = @transform_1, window_bounds = array<i64: 128, 32>}, {transform_indices = @transform_2, window_bounds = array<i64: 1, 32>}, {transform_indices = @transform_3, window_bounds = array<i64: 16, 32>}, {transform_indices = @transform_4, window_bounds = array<i64: 16, 1>}, {transform_indices = @transform_5, window_bounds = array<i64: 16, 32>}]} {
    %c0 = arith.constant 0 : index
    %c0_0 = arith.constant 0 : index
    %0 = vector.load %arg2[%c0, %c0_0] : memref<16x128xbf16, #tpu.memory_space<vmem>>, vector<16x128xbf16>
    %c0_1 = arith.constant 0 : index
    %c0_2 = arith.constant 0 : index
    %1 = vector.load %arg3[%c0_1, %c0_2] : memref<128x32xbf16, #tpu.memory_space<vmem>>, vector<128x32xbf16>
    %cst = arith.constant dense<0.000000e+00> : vector<16x32xf32>
    %2 = tpu.matmul %0, %1, %cst {dimension_numbers = #tpu.dot_dimension_numbers<[1], [0], [0], [1], [0, 0, 1, 1], [], []>} : vector<16x128xbf16>, vector<128x32xbf16>, vector<16x32xf32> -> vector<16x32xf32>
    %c0_3 = arith.constant 0 : index
    %c0_4 = arith.constant 0 : index
    %3 = vector.load %arg4[%c0_3, %c0_4] : memref<1x32xf32, #tpu.memory_space<vmem>>, vector<1x32xf32>
    %4 = vector.broadcast %3 : vector<1x32xf32> to vector<16x32xf32>
    %5 = arith.addf %2, %4 : vector<16x32xf32>
    %c0_5 = arith.constant 0 : index
    %c0_6 = arith.constant 0 : index
    %6 = vector.load %arg5[%c0_5, %c0_6] : memref<16x32xf32, #tpu.memory_space<vmem>>, vector<16x32xf32>
    %c0_7 = arith.constant 0 : index
    %c0_8 = arith.constant 0 : index
    %7 = vector.load %arg6[%c0_7, %c0_8] : memref<16x1xf32, #tpu.memory_space<vmem>>, vector<16x1xf32>
    %8 = vector.broadcast %7 : vector<16x1xf32> to vector<16x32xf32>
    %9 = arith.mulf %8, %5 : vector<16x32xf32>
    %10 = arith.addf %6, %9 : vector<16x32xf32>
    %c0_9 = arith.constant 0 : index
    %c0_10 = arith.constant 0 : index
    %11 = vector.load %arg7[%c0_9, %c0_10] : memref<16x32xf32, #tpu.memory_space<vmem>>, vector<16x32xf32>
    tpu.vector_store %arg7[%c0_9, %c0_10], %10 {strides = array<i32>} : memref<16x32xf32, #tpu.memory_space<vmem>>, vector<16x32xf32>,
    return
  }
  func.func @transform_0(%arg0: i32, %arg1: i32) -> (i32, i32) {
    %c0_i32 = arith.constant 0 : i32
    %c0_i32_0 = arith.constant 0 : i32
    return %arg0, %c0_i32 : i32, i32
  }
  func.func @transform_1(%arg0: i32, %arg1: i32) -> (i32, i32) {
    %c0_i32 = arith.constant 0 : i32
    %c0_i32_0 = arith.constant 0 : i32
    return %c0_i32, %arg1 : i32, i32
  }
  func.func @transform_2(%arg0: i32, %arg1: i32) -> (i32, i32) {
    %c0_i32 = arith.constant 0 : i32
    %c0_i32_0 = arith.constant 0 : i32
    return %c0_i32, %arg1 : i32, i32
  }
  func.func @transform_3(%arg0: i32, %arg1: i32) -> (i32, i32) {
    %c0_i32 = arith.constant 0 : i32
    return %arg0, %arg1 : i32, i32
  }
  func.func @transform_4(%arg0: i32, %arg1: i32) -> (i32, i32) {
    %c0_i32 = arith.constant 0 : i32
    %c0_i32_0 = arith.constant 0 : i32
    return %arg0, %c0_i32 : i32, i32
  }
  func.func @transform_5(%arg0: i32, %arg1: i32) -> (i32, i32) {
    %c0_i32 = arith.constant 0 : i32
    return %arg0, %arg1 : i32, i32
  }
}

</mosaic_0001>

<llo_original>
// kernel: _block_forward.8
$region0: #{_block_forward.8}
  #allocation0 [shape = 'u32[]', space=smem, size = 0x4, offset = 0x4, fixed_abs, tag = 'smem constant byte address 0x4 - core index']
  #allocation1 [shape = 'u32[144,128]{1,0:T(1,128)}', space=vmem, size = 0x12000, scoped, tag = 'internal scratch']
  %s0 = inlined_call_operand.vmem [shape: f32[16,32], index: 0, kind: input, shape index: {}]
  %s1 = inlined_call_operand.vmem [shape: f32[1,32], index: 1, kind: input, shape index: {}]
  %s2 = inlined_call_operand.vmem [shape: f32[1,32], index: 2, kind: input, shape index: {}]
  %s3 = inlined_call_operand.vmem [shape: bf16[32,128], index: 3, kind: input, shape index: {}]
  %s4 = inlined_call_operand.vmem [shape: f32[1,128], index: 4, kind: input, shape index: {}]
  %s5 = inlined_call_operand.vmem [shape: bf16[16,128], index: 5, kind: output, shape index: {}]
  %s6 = sld [smem:[#allocation0]]
  $region30: #{_block_forward.8} parent=0
    _
  %s8 = ssub.s32 1, %s6
  %s9 = scalar_select 0, %s8, %s6
  // Predicated region
  $region2: #{_block_forward.8} parent=0 // pred_check
    _
  $region3: #{_block_forward.8} parent=0 // pred_check_branch
    %11 = sbr.rel (0) target = $region5
  $region4: #{_block_forward.8} parent=0 // pred_region
    _
  $region5: #{_block_forward.8} parent=0 // pred_fallthru
    _
  // Predicated region
  $region6: #{_block_forward.8} parent=0 // pred_check
    _
  $region7: #{_block_forward.8} parent=0 // pred_check_branch
    %13 = sbr.rel (0) target = $region9
  $region8: #{_block_forward.8} parent=0 // pred_region
    _
  $region9: #{_block_forward.8} parent=0 // pred_fallthru
    _
  // Predicated region
  $region10: #{_block_forward.8} parent=0 // pred_check
    _
  $region11: #{_block_forward.8} parent=0 // pred_check_branch
    %15 = sbr.rel (0) target = $region13
  $region12: #{_block_forward.8} parent=0 // pred_region
    _
  $region13: #{_block_forward.8} parent=0 // pred_fallthru
    _
  // Predicated region
  $region14: #{_block_forward.8} parent=0 // pred_check
    _
  $region15: #{_block_forward.8} parent=0 // pred_check_branch
    %17 = sbr.rel (0) target = $region17
  $region16: #{_block_forward.8} parent=0 // pred_region
    _
  $region17: #{_block_forward.8} parent=0 // pred_fallthru
    _
  // Predicated region
  $region18: #{_block_forward.8} parent=0 // pred_check
    _
  $region19: #{_block_forward.8} parent=0 // pred_check_branch
    %19 = sbr.rel (0) target = $region21
  $region20: #{_block_forward.8} parent=0 // pred_region
    _
  $region21: #{_block_forward.8} parent=0 // pred_fallthru
    _
  %v21 = vld [vmem:[%s0] sm:$0xff]
  %v22 = vld [vmem:[%s0 + $0x8] sm:$0xff]
  %vm23 = vcmask 261120
  %v24 = vsel %vm23, %v21, 0.0
  %25 = vadd.xlane.f32.xlu0 %v24
  %v26 = vpop.xlane.xlu0 %25
  %v27 = vsel %vm23, %v22, 0.0
  %28 = vadd.xlane.f32.xlu0 %v27
  %v29 = vpop.xlane.xlu0 %28
  %v30 = vrcp.pop 32.0
  %v31 = vmul.f32 %v26, %v30
  %v32 = vmul.f32 %v29, %v30
  %v33 = vsub.f32 %v21, %v31
  %v34 = vsub.f32 %v22, %v32
  %v35 = vmul.f32 %v33, %v33
  %v36 = vmul.f32 %v34, %v34
  %v37 = vsel %vm23, %v35, 0.0
  %38 = vadd.xlane.f32.xlu0 %v37
  %v39 = vpop.xlane.xlu0 %38
  %v40 = vsel %vm23, %v36, 0.0
  %41 = vadd.xlane.f32.xlu0 %v40
  %v42 = vpop.xlane.xlu0 %41
  %v43 = vmul.f32 %v39, %v30
  %v44 = vmul.f32 %v42, %v30
  %v45 = vadd.f32 %v43, 1e-05
  %v46 = vadd.f32 %v44, 1e-05
  %v47 = vrsqrt.pop %v45
  %v48 = vrsqrt.pop %v46
  %v49 = vmul.f32 %v33, %v47
  %v50 = vmul.f32 %v34, %v48
  %v51 = vld [vmem:[%s1] sm:$0x1]
  %v53 = vlaneseq
  %v54 = vshrl.u32 %v53, 7
  %v55 = vsub.s32 0, %v54
  %v56 = vrot.slane %v51, %v55
  %v58 = vmul.f32 %v49, %v56
  %v59 = vmul.f32 %v50, %v56
  %v60 = vld [vmem:[%s2] sm:$0x1]
  %v62 = vlaneseq
  %v63 = vshrl.u32 %v62, 7
  %v64 = vsub.s32 0, %v63
  %v65 = vrot.slane %v60, %v64
  %v67 = vadd.f32 %v58, %v65
  %v68 = vadd.f32 %v59, %v65
  %v69 = vpack.c.bf16 %v68, %v67
  %v70 = vld [vmem:[%s3] sm:$0xf]
  %v71 = vld [vmem:[%s3 + $0x4] sm:$0xf]
  %v72 = vld [vmem:[%s3 + $0x8] sm:$0xf]
  %v73 = vld [vmem:[%s3 + $0xc] sm:$0xf]
  %v74 = vld [vmem:[%s4] sm:$0x1]
  %v76 = vlaneseq
  %v77 = vshrl.u32 %v76, 7
  %v78 = vsub.s32 0, %v77
  %v79 = vrot.slane %v74, %v78
  %v85 = vunpack.c.l.b16 %v70
  %v86 = vunpack.c.l.b16 %v71
  %v87 = vunpack.c.l.b16 %v72
  %v88 = vunpack.c.l.b16 %v73
  %v89 = vpack.c.b16 %v86, %v85
  %v90 = vpack.c.b16 %v88, %v87
  %v94 = vsel %vm23, %v69, 0
  %96 = vmatprep.subr.bf16.mxu0 0
  %97 = vmatpush1.bf16.msra.mxu0 %v89
  %98 = vmatprep.subr.bf16.mxu0 0
  %99 = vmatpush1.bf16.msra.mxu0 %v90
  %100 = vmatprep.subr.bf16.mxu0 0
  %101 = vmatpush1.bf16.msra.mxu0 0
  %102 = vmatprep.subr.bf16.mxu0 0
  %103 = vmatpush1.bf16.msra.mxu0 0
  %104 = vmatprep.subr.bf16.mxu0 0
  %105 = vmatpush1.bf16.msra.mxu0 0
  %106 = vmatprep.subr.bf16.mxu0 0
  %107 = vmatpush1.bf16.msra.mxu0 0
  %108 = vmatprep.subr.bf16.mxu0 0
  %109 = vmatpush1.bf16.msra.mxu0 0
  %110 = vmatprep.subr.bf16.mxu0 0
  %111 = vmatpush1.bf16.msra.mxu0 0
  %112 = vmatprep.subr.bf16.mxu0 0
  %113 = vmatpush1.bf16.msra.mxu0 0
  %114 = vmatprep.subr.bf16.mxu0 0
  %115 = vmatpush1.bf16.msra.mxu0 0
  %116 = vmatprep.subr.bf16.mxu0 0
  %117 = vmatpush1.bf16.msra.mxu0 0
  %118 = vmatprep.subr.bf16.mxu0 0
  %119 = vmatpush1.bf16.msra.mxu0 0
  %120 = vmatprep.subr.bf16.mxu0 0
  %121 = vmatpush1.bf16.msra.mxu0 0
  %122 = vmatprep.subr.bf16.mxu0 0
  %123 = vmatpush1.bf16.msra.mxu0 0
  %124 = vmatprep.subr.bf16.mxu0 0
  %125 = vmatpush1.bf16.msra.mxu0 0
  %126 = vmatprep.subr.bf16.mxu0 0
  %127 = vmatpush1.bf16.msra.mxu0 0
  %128 = vmatprep.mubr.bf16.mxu0 0
  %129 = vmatmul.mubr.bf16.gmra.mrb[0].mxu0 %v94
  %v130 = vpop.f32.mrb[0].mxu0
  %v131 = vadd.f32 %v79, %v130
  %v132 = vpop.f32.mrb[0].mxu0
  %v133 = vpop.f32.mrb[0].mxu0
  %v134 = vadd.f32 %v79, %v133
  %v135 = vpop.f32.mrb[0].mxu0
  %136 = vdwg.mxu0
  %v137 = vmul.f32 %v131, %v131
  %v138 = vmul.f32 %v134, %v134
  %v139 = vmul.f32 %v131, %v137
  %v140 = vmul.f32 %v134, %v138
  %v141 = vmul.f32 %v139, 0.044715
  %v142 = vmul.f32 %v140, 0.044715
  %v143 = vadd.f32 %v131, %v141
  %v144 = vadd.f32 %v134, %v142
  %v145 = vmul.f32 %v143, 0.7978846
  %v146 = vmul.f32 %v144, 0.7978846
  %v147 = vtanh.pop %v145
  %v148 = vtanh.pop %v146
  %v149 = vadd.f32 %v147, 1.0
  %v150 = vadd.f32 %v148, 1.0
  %v151 = vmul.f32 %v149, 0.5
  %v152 = vmul.f32 %v150, 0.5
  %v153 = vmul.f32 %v131, %v151
  %v154 = vmul.f32 %v134, %v152
  %v155 = vpack.c.bf16 %v154, %v153
  %v157 = vunpack.c.l.b16 %v155
  %v158 = vunpack.c.h.b16 %v155
  %v159 = vpack.c.b16 %v157, %v157
  %v160 = vpack.c.b16 %v158, %v158
  %163 = vst [vmem:[%s5] sm:$0xf] %v159
  %164 = vst [vmem:[%s5 + $0x4] sm:$0xf] %v160
  // Predicated region
  $region22: #{_block_forward.8} parent=0 // pred_check
    _
  $region23: #{_block_forward.8} parent=0 // pred_check_branch
    %166 = sbr.rel (0) target = $region25
  $region24: #{_block_forward.8} parent=0 // pred_region
    _
  $region25: #{_block_forward.8} parent=0 // pred_fallthru
    _
  // Predicated region
  $region26: #{_block_forward.8} parent=0 // pred_check
    _
  $region27: #{_block_forward.8} parent=0 // pred_check_branch
    %168 = sbr.rel (0) target = $region29
  $region28: #{_block_forward.8} parent=0 // pred_region
    _
  $region29: #{_block_forward.8} parent=0 // pred_fallthru
    _

// kernel: _block_forward.5
$region0: #{_block_forward.5}
  #allocation0 [shape = 'u32[]', space=smem, size = 0x4, offset = 0x4, fixed_abs, tag = 'smem constant byte address 0x4 - core index']
  #allocation1 [shape = 'u32[144,128]{1,0:T(1,128)}', space=vmem, size = 0x12000, scoped, tag = 'internal scratch']
  %s0 = inlined_call_operand.vmem [shape: f32[16,32], index: 0, kind: input, shape index: {}]
  %s1 = inlined_call_operand.vmem [shape: f32[1,32], index: 1, kind: input, shape index: {}]
  %s2 = inlined_call_operand.vmem [shape: f32[1,32], index: 2, kind: input, shape index: {}]
  %s3 = inlined_call_operand.vmem [shape: bf16[32,96], index: 3, kind: input, shape index: {}]
  %s4 = inlined_call_operand.vmem [shape: f32[1,96], index: 4, kind: input, shape index: {}]
  %s5 = inlined_call_operand.vmem [shape: bf16[16,96], index: 5, kind: output, shape index: {}]
  %s6 = sld [smem:[#allocation0]]
  $region30: #{_block_forward.5} parent=0
    _
  %s8 = ssub.s32 1, %s6
  %s9 = scalar_select 0, %s8, %s6
  // Predicated region
  $region2: #{_block_forward.5} parent=0 // pred_check
    _
  $region3: #{_block_forward.5} parent=0 // pred_check_branch
    %11 = sbr.rel (0) target = $region5
  $region4: #{_block_forward.5} parent=0 // pred_region
    _
  $region5: #{_block_forward.5} parent=0 // pred_fallthru
    _
  // Predicated region
  $region6: #{_block_forward.5} parent=0 // pred_check
    _
  $region7: #{_block_forward.5} parent=0 // pred_check_branch
    %13 = sbr.rel (0) target = $region9
  $region8: #{_block_forward.5} parent=0 // pred_region
    _
  $region9: #{_block_forward.5} parent=0 // pred_fallthru
    _
  // Predicated region
  $region10: #{_block_forward.5} parent=0 // pred_check
    _
  $region11: #{_block_forward.5} parent=0 // pred_check_branch
    %15 = sbr.rel (0) target = $region13
  $region12: #{_block_forward.5} parent=0 // pred_region
    _
  $region13: #{_block_forward.5} parent=0 // pred_fallthru
    _
  // Predicated region
  $region14: #{_block_forward.5} parent=0 // pred_check
    _
  $region15: #{_block_forward.5} parent=0 // pred_check_branch
    %17 = sbr.rel (0) target = $region17
  $region16: #{_block_forward.5} parent=0 // pred_region
    _
  $region17: #{_block_forward.5} parent=0 // pred_fallthru
    _
  // Predicated region
  $region18: #{_block_forward.5} parent=0 // pred_check
    _
  $region19: #{_block_forward.5} parent=0 // pred_check_branch
    %19 = sbr.rel (0) target = $region21
  $region20: #{_block_forward.5} parent=0 // pred_region
    _
  $region21: #{_block_forward.5} parent=0 // pred_fallthru
    _
  %v21 = vld [vmem:[%s0] sm:$0xff]
  %v22 = vld [vmem:[%s0 + $0x8] sm:$0xff]
  %vm23 = vcmask 261120
  %v24 = vsel %vm23, %v21, 0.0
  %25 = vadd.xlane.f32.xlu0 %v24
  %v26 = vpop.xlane.xlu0 %25
  %v27 = vsel %vm23, %v22, 0.0
  %28 = vadd.xlane.f32.xlu0 %v27
  %v29 = vpop.xlane.xlu0 %28
  %v30 = vrcp.pop 32.0
  %v31 = vmul.f32 %v26, %v30
  %v32 = vmul.f32 %v29, %v30
  %v33 = vsub.f32 %v21, %v31
  %v34 = vsub.f32 %v22, %v32
  %v35 = vmul.f32 %v33, %v33
  %v36 = vmul.f32 %v34, %v34
  %v37 = vsel %vm23, %v35, 0.0
  %38 = vadd.xlane.f32.xlu0 %v37
  %v39 = vpop.xlane.xlu0 %38
  %v40 = vsel %vm23, %v36, 0.0
  %41 = vadd.xlane.f32.xlu0 %v40
  %v42 = vpop.xlane.xlu0 %41
  %v43 = vmul.f32 %v39, %v30
  %v44 = vmul.f32 %v42, %v30
  %v45 = vadd.f32 %v43, 1e-05
  %v46 = vadd.f32 %v44, 1e-05
  %v47 = vrsqrt.pop %v45
  %v48 = vrsqrt.pop %v46
  %v49 = vmul.f32 %v33, %v47
  %v50 = vmul.f32 %v34, %v48
  %v51 = vld [vmem:[%s1] sm:$0x1]
  %v53 = vlaneseq
  %v54 = vshrl.u32 %v53, 7
  %v55 = vsub.s32 0, %v54
  %v56 = vrot.slane %v51, %v55
  %v58 = vmul.f32 %v49, %v56
  %v59 = vmul.f32 %v50, %v56
  %v60 = vld [vmem:[%s2] sm:$0x1]
  %v62 = vlaneseq
  %v63 = vshrl.u32 %v62, 7
  %v64 = vsub.s32 0, %v63
  %v65 = vrot.slane %v60, %v64
  %v67 = vadd.f32 %v58, %v65
  %v68 = vadd.f32 %v59, %v65
  %v69 = vpack.c.bf16 %v68, %v67
  %v70 = vld [vmem:[%s3] sm:$0xf]
  %v71 = vld [vmem:[%s3 + $0x4] sm:$0xf]
  %v72 = vld [vmem:[%s3 + $0x8] sm:$0xf]
  %v73 = vld [vmem:[%s3 + $0xc] sm:$0xf]
  %v74 = vld [vmem:[%s4] sm:$0x1]
  %v76 = vlaneseq
  %v77 = vshrl.u32 %v76, 7
  %v78 = vsub.s32 0, %v77
  %v79 = vrot.slane %v74, %v78
  %v85 = vunpack.c.l.b16 %v70
  %v86 = vunpack.c.l.b16 %v71
  %v87 = vunpack.c.l.b16 %v72
  %v88 = vunpack.c.l.b16 %v73
  %v89 = vpack.c.b16 %v86, %v85
  %v90 = vpack.c.b16 %v88, %v87
  %v94 = vsel %vm23, %v69, 0
  %96 = vmatprep.subr.bf16.mxu0 0
  %97 = vmatpush1.bf16.msra.mxu0 %v89
  %98 = vmatprep.subr.bf16.mxu0 0
  %99 = vmatpush1.bf16.msra.mxu0 %v90
  %100 = vmatprep.subr.bf16.mxu0 0
  %101 = vmatpush1.bf16.msra.mxu0 0
  %102 = vmatprep.subr.bf16.mxu0 0
  %103 = vmatpush1.bf16.msra.mxu0 0
  %104 = vmatprep.subr.bf16.mxu0 0
  %105 = vmatpush1.bf16.msra.mxu0 0
  %106 = vmatprep.subr.bf16.mxu0 0
  %107 = vmatpush1.bf16.msra.mxu0 0
  %108 = vmatprep.subr.bf16.mxu0 0
  %109 = vmatpush1.bf16.msra.mxu0 0
  %110 = vmatprep.subr.bf16.mxu0 0
  %111 = vmatpush1.bf16.msra.mxu0 0
  %112 = vmatprep.subr.bf16.mxu0 0
  %113 = vmatpush1.bf16.msra.mxu0 0
  %114 = vmatprep.subr.bf16.mxu0 0
  %115 = vmatpush1.bf16.msra.mxu0 0
  %116 = vmatprep.subr.bf16.mxu0 0
  %117 = vmatpush1.bf16.msra.mxu0 0
  %118 = vmatprep.subr.bf16.mxu0 0
  %119 = vmatpush1.bf16.msra.mxu0 0
  %120 = vmatprep.subr.bf16.mxu0 0
  %121 = vmatpush1.bf16.msra.mxu0 0
  %122 = vmatprep.subr.bf16.mxu0 0
  %123 = vmatpush1.bf16.msra.mxu0 0
  %124 = vmatprep.subr.bf16.mxu0 0
  %125 = vmatpush1.bf16.msra.mxu0 0
  %126 = vmatprep.subr.bf16.mxu0 0
  %127 = vmatpush1.bf16.msra.mxu0 0
  %128 = vmatprep.mubr.bf16.mxu0 0
  %129 = vmatmul.mubr.bf16.gmra.mrb[0].mxu0 %v94
  %v130 = vpop.f32.mrb[0].mxu0
  %v131 = vadd.f32 %v79, %v130
  %v132 = vpop.f32.mrb[0].mxu0
  %v133 = vpop.f32.mrb[0].mxu0
  %v134 = vadd.f32 %v79, %v133
  %v135 = vpop.f32.mrb[0].mxu0
  %136 = vdwg.mxu0
  %v137 = vpack.c.bf16 %v134, %v131
  %v139 = vunpack.c.l.b16 %v137
  %v140 = vunpack.c.h.b16 %v137
  %v141 = vpack.c.b16 %v139, %v139
  %v142 = vpack.c.b16 %v140, %v140
  %vm145 = vcmask 781312
  %146 = vst.msk [vmem:[%s5] sm:$0xf] %vm145, %v141
  %147 = vst.msk [vmem:[%s5 + $0x4] sm:$0xf] %vm145, %v142
  // Predicated region
  $region22: #{_block_forward.5} parent=0 // pred_check
    _
  $region23: #{_block_forward.5} parent=0 // pred_check_branch
    %149 = sbr.rel (0) target = $region25
  $region24: #{_block_forward.5} parent=0 // pred_region
    _
  $region25: #{_block_forward.5} parent=0 // pred_fallthru
    _
  // Predicated region
  $region26: #{_block_forward.5} parent=0 // pred_check
    _
  $region27: #{_block_forward.5} parent=0 // pred_check_branch
    %151 = sbr.rel (0) target = $region29
  $region28: #{_block_forward.5} parent=0 // pred_region
    _
  $region29: #{_block_forward.5} parent=0 // pred_fallthru
    _

// kernel: _block_forward.7
$region0: #{_block_forward.7}
  #allocation0 [shape = 'u32[]', space=smem, size = 0x4, offset = 0x4, fixed_abs, tag = 'smem constant byte address 0x4 - core index']
  #allocation1 [shape = 'u32[144,128]{1,0:T(1,128)}', space=vmem, size = 0x12000, scoped, tag = 'internal scratch']
  %s0 = inlined_call_operand.vmem [shape: bf16[16,32], index: 0, kind: input, shape index: {}]
  %s1 = inlined_call_operand.vmem [shape: bf16[32,32], index: 1, kind: input, shape index: {}]
  %s2 = inlined_call_operand.vmem [shape: f32[1,32], index: 2, kind: input, shape index: {}]
  %s3 = inlined_call_operand.vmem [shape: f32[16,32], index: 3, kind: input, shape index: {}, may-alias: {3,5}]
  %s4 = inlined_call_operand.vmem [shape: f32[16,1], index: 4, kind: input, shape index: {}]
  %s5 = inlined_call_operand.vmem [shape: f32[16,32], index: 5, kind: output, shape index: {}, may-alias: {3,5}]
  %s6 = sld [smem:[#allocation0]]
  $region30: #{_block_forward.7} parent=0
    _
  %s8 = ssub.s32 1, %s6
  %s9 = scalar_select 0, %s8, %s6
  // Predicated region
  $region2: #{_block_forward.7} parent=0 // pred_check
    _
  $region3: #{_block_forward.7} parent=0 // pred_check_branch
    %11 = sbr.rel (0) target = $region5
  $region4: #{_block_forward.7} parent=0 // pred_region
    _
  $region5: #{_block_forward.7} parent=0 // pred_fallthru
    _
  // Predicated region
  $region6: #{_block_forward.7} parent=0 // pred_check
    _
  $region7: #{_block_forward.7} parent=0 // pred_check_branch
    %13 = sbr.rel (0) target = $region9
  $region8: #{_block_forward.7} parent=0 // pred_region
    _
  $region9: #{_block_forward.7} parent=0 // pred_fallthru
    _
  // Predicated region
  $region10: #{_block_forward.7} parent=0 // pred_check
    _
  $region11: #{_block_forward.7} parent=0 // pred_check_branch
    %15 = sbr.rel (0) target = $region13
  $region12: #{_block_forward.7} parent=0 // pred_region
    _
  $region13: #{_block_forward.7} parent=0 // pred_fallthru
    _
  // Predicated region
  $region14: #{_block_forward.7} parent=0 // pred_check
    _
  $region15: #{_block_forward.7} parent=0 // pred_check_branch
    %17 = sbr.rel (0) target = $region17
  $region16: #{_block_forward.7} parent=0 // pred_region
    _
  $region17: #{_block_forward.7} parent=0 // pred_fallthru
    _
  // Predicated region
  $region18: #{_block_forward.7} parent=0 // pred_check
    _
  $region19: #{_block_forward.7} parent=0 // pred_check_branch
    %19 = sbr.rel (0) target = $region21
  $region20: #{_block_forward.7} parent=0 // pred_region
    _
  $region21: #{_block_forward.7} parent=0 // pred_fallthru
    _
  %v21 = vld [vmem:[%s0] sm:$0xf]
  %v22 = vld [vmem:[%s0 + $0x4] sm:$0xf]
  %v23 = vld [vmem:[%s1] sm:$0xf]
  %v24 = vld [vmem:[%s1 + $0x4] sm:$0xf]
  %v25 = vld [vmem:[%s1 + $0x8] sm:$0xf]
  %v26 = vld [vmem:[%s1 + $0xc] sm:$0xf]
  %v27 = vld [vmem:[%s2] sm:$0x1]
  %v29 = vlaneseq
  %v30 = vshrl.u32 %v29, 7
  %v31 = vsub.s32 0, %v30
  %v32 = vrot.slane %v27, %v31
  %v36 = vunpack.c.l.b16 %v21
  %v37 = vunpack.c.l.b16 %v22
  %v38 = vpack.c.b16 %v37, %v36
  %v43 = vunpack.c.l.b16 %v23
  %v44 = vunpack.c.l.b16 %v24
  %v45 = vunpack.c.l.b16 %v25
  %v46 = vunpack.c.l.b16 %v26
  %v47 = vpack.c.b16 %v44, %v43
  %v48 = vpack.c.b16 %v46, %v45
  %vm51 = vcmask 261120
  %v53 = vsel %vm51, %v38, 0
  %55 = vmatprep.subr.bf16.mxu0 0
  %56 = vmatpush1.bf16.msra.mxu0 %v47
  %57 = vmatprep.subr.bf16.mxu0 0
  %58 = vmatpush1.bf16.msra.mxu0 %v48
  %59 = vmatprep.subr.bf16.mxu0 0
  %60 = vmatpush1.bf16.msra.mxu0 0
  %61 = vmatprep.subr.bf16.mxu0 0
  %62 = vmatpush1.bf16.msra.mxu0 0
  %63 = vmatprep.subr.bf16.mxu0 0
  %64 = vmatpush1.bf16.msra.mxu0 0
  %65 = vmatprep.subr.bf16.mxu0 0
  %66 = vmatpush1.bf16.msra.mxu0 0
  %67 = vmatprep.subr.bf16.mxu0 0
  %68 = vmatpush1.bf16.msra.mxu0 0
  %69 = vmatprep.subr.bf16.mxu0 0
  %70 = vmatpush1.bf16.msra.mxu0 0
  %71 = vmatprep.subr.bf16.mxu0 0
  %72 = vmatpush1.bf16.msra.mxu0 0
  %73 = vmatprep.subr.bf16.mxu0 0
  %74 = vmatpush1.bf16.msra.mxu0 0
  %75 = vmatprep.subr.bf16.mxu0 0
  %76 = vmatpush1.bf16.msra.mxu0 0
  %77 = vmatprep.subr.bf16.mxu0 0
  %78 = vmatpush1.bf16.msra.mxu0 0
  %79 = vmatprep.subr.bf16.mxu0 0
  %80 = vmatpush1.bf16.msra.mxu0 0
  %81 = vmatprep.subr.bf16.mxu0 0
  %82 = vmatpush1.bf16.msra.mxu0 0
  %83 = vmatprep.subr.bf16.mxu0 0
  %84 = vmatpush1.bf16.msra.mxu0 0
  %85 = vmatprep.subr.bf16.mxu0 0
  %86 = vmatpush1.bf16.msra.mxu0 0
  %87 = vmatprep.mubr.bf16.mxu0 0
  %88 = vmatmul.mubr.bf16.gmra.mrb[0].mxu0 %v53
  %v89 = vpop.f32.mrb[0].mxu0
  %v90 = vadd.f32 %v32, %v89
  %v91 = vpop.f32.mrb[0].mxu0
  %v92 = vpop.f32.mrb[0].mxu0
  %v93 = vadd.f32 %v32, %v92
  %v94 = vpop.f32.mrb[0].mxu0
  %95 = vdwg.mxu0
  %v96 = vld [vmem:[%s3] sm:$0xff]
  %v97 = vld [vmem:[%s3 + $0x8] sm:$0xff]
  %v98 = vld [vmem:[%s4] sm:$0xff]
  %v99 = vld [vmem:[%s4 + $0x8] sm:$0xff]
  %101 = vset.pattern.permute.xlu0 0
  %102 = vperm.xlu0 %101, %v98
  %v103 = vpop.permute.xlu0 %102
  %106 = vset.pattern.permute.xlu0 0
  %107 = vperm.xlu0 %106, %v99
  %v108 = vpop.permute.xlu0 %107
  %v110 = vmul.f32 %v103, %v90
  %v111 = vmul.f32 %v108, %v93
  %v112 = vadd.f32 %v96, %v110
  %v113 = vadd.f32 %v97, %v111
  %114 = vst.msk [vmem:[%s5] sm:$0xff] %vm51, %v112
  %115 = vst.msk [vmem:[%s5 + $0x8] sm:$0xff] %vm51, %v113
  // Predicated region
  $region22: #{_block_forward.7} parent=0 // pred_check
    _
  $region23: #{_block_forward.7} parent=0 // pred_check_branch
    %117 = sbr.rel (0) target = $region25
  $region24: #{_block_forward.7} parent=0 // pred_region
    _
  $region25: #{_block_forward.7} parent=0 // pred_fallthru
    _
  // Predicated region
  $region26: #{_block_forward.7} parent=0 // pred_check
    _
  $region27: #{_block_forward.7} parent=0 // pred_check_branch
    %119 = sbr.rel (0) target = $region29
  $region28: #{_block_forward.7} parent=0 // pred_region
    _
  $region29: #{_block_forward.7} parent=0 // pred_fallthru
    _

// kernel: _block_forward.6
$region0: #{_block_forward.6}
  #allocation0 [shape = 'u32[]', space=smem, size = 0x4, offset = 0x4, fixed_abs, tag = 'smem constant byte address 0x4 - core index']
  #allocation1 [shape = 'u32[144,128]{1,0:T(1,128)}', space=vmem, size = 0x12000, scoped, tag = 'internal scratch']
  %s0 = inlined_call_operand.vmem [shape: bf16[2,8,96], index: 0, kind: input, shape index: {}]
  %s1 = inlined_call_operand.vmem [shape: bf16[2,8,32], index: 1, kind: output, shape index: {}]
  %s2 = sld [smem:[#allocation0]]
  $region37: #{_block_forward.6} parent=0
    _
  %s4 = ssub.s32 1, %s2
  %s5 = scalar_select 0, %s4, %s2
  loop: start=0, step=1, limit=4
  $region2: #{_block_forward.6} parent=0 // loop_pre_header
    _
  $region3: #{_block_forward.6} parent=0 // loop_header
    %s7 = sphi 0, %s11
    %p8 = scmp.ge.s32.totalorder %s7, 4
    %s17 = sphi 0, %s19
    %s20 = sphi 0, %s17
    %s21 = sphi 0, %s20
    %s37 = sphi 0, %s21
    %s43 = sphi 0, %s45
    %s46 = sphi 0, %s43
    %s47 = sphi 0, %s46
    %s63 = sphi 0, %s47
  $region4: #{_block_forward.6} parent=0 // loop_header_branch
    %10 = sbr.rel (%p8) target = $region8
  $region5: #{_block_forward.6} parent=0 // loop_body
    %s12 = ssub.s32 %s7, 1
    %s13 = ssub.s32 %s7, 2
    %s14 = sadd.s32 %s7, 1
    %s15 = ssub.s32 %s7, %s14
    %p16 = scmp.eq.s32.totalorder %s15, 0
    %s18 = sadd.s32 %s17, 1
    %s19 = scalar_select %p16, %s17, %s18
    %p22 = pneg %p16
    %p23 = scmp.eq.s32.totalorder %s7, 1
    %p24 = por %p22, %p23
    %p25 = scmp.ne.s32.totalorder %s17, %s20
    %p26 = scmp.eq.s32.totalorder %s7, 0
    %p27 = por %p25, %p26
    %p28 = scmp.ne.s32.totalorder %s17, %s20
    %p29 = scmp.eq.s32.totalorder %s12, 1
    %p30 = por %p28, %p29
    %p31 = scmp.ne.s32.totalorder %s20, %s21
    %p32 = scmp.eq.s32.totalorder %s12, 0
    %p33 = por %p31, %p32
    %p34 = scmp.ne.s32.totalorder %s20, %s21
    %p35 = scmp.eq.s32.totalorder %s13, 1
    %p36 = por %p34, %p35
    %p38 = scmp.ne.s32.totalorder %s21, %s37
    %p39 = scmp.eq.s32.totalorder %s13, 0
    %p40 = por %p38, %p39
    %s41 = ssub.s32 %s7, %s14
    %p42 = scmp.eq.s32.totalorder %s41, 0
    %s44 = sadd.s32 %s43, 1
    %s45 = scalar_select %p42, %s43, %s44
    %p48 = pneg %p42
    %p49 = scmp.eq.s32.totalorder %s7, 1
    %p50 = por %p48, %p49
    %p51 = scmp.ne.s32.totalorder %s43, %s46
    %p52 = scmp.eq.s32.totalorder %s7, 0
    %p53 = por %p51, %p52
    %p54 = scmp.ne.s32.totalorder %s43, %s46
    %p55 = scmp.eq.s32.totalorder %s12, 1
    %p56 = por %p54, %p55
    %p57 = scmp.ne.s32.totalorder %s46, %s47
    %p58 = scmp.eq.s32.totalorder %s12, 0
    %p59 = por %p57, %p58
    %p60 = scmp.ne.s32.totalorder %s46, %s47
    %p61 = scmp.eq.s32.totalorder %s13, 1
    %p62 = por %p60, %p61
    %p64 = scmp.ne.s32.totalorder %s47, %s63
    %p65 = scmp.eq.s32.totalorder %s13, 0
    %p66 = por %p64, %p65
    %p67 = scmp.le.s32.totalorder 1, %s7
    %p68 = scmp.lt.s32.totalorder %s7, 3
    %p69 = pnand %p67, %p68
    %p70 = pneg %p69
    // Predicated region
    $region9: #{_block_forward.6} parent=5 // pred_check
      _
    $region10: #{_block_forward.6} parent=5 // pred_check_branch
      %72 = sbr.rel (%p69) target = $region12
    $region11: #{_block_forward.6} parent=5 // pred_region
      %s73 = ssub.s32 %s7, 1
    $region12: #{_block_forward.6} parent=5 // pred_fallthru
      _
    %p74 = scmp.lt.s32.totalorder %s7, 2
    // Predicated region
    $region13: #{_block_forward.6} parent=5 // pred_check
      %p75 = pneg %p74
    $region14: #{_block_forward.6} parent=5 // pred_check_branch
      %77 = sbr.rel (%p75) target = $region16
    $region15: #{_block_forward.6} parent=5 // pred_region
      // Predicated region
      $region17: #{_block_forward.6} parent=15 // pred_check
        %p78 = pneg %p27
      $region18: #{_block_forward.6} parent=15 // pred_check_branch
        %80 = sbr.rel (%p78) target = $region20
      $region19: #{_block_forward.6} parent=15 // pred_region
        %p81 = scmp.lt.s32.totalorder %s7, 1
        %s82 = scalar_select %p81, %s7, 1
        %s83 = smul.addr %s82, 4
        %s84 = scalar_lea.vmem %s0, %s83
      $region20: #{_block_forward.6} parent=15 // pred_fallthru
        _
    $region16: #{_block_forward.6} parent=5 // pred_fallthru
      _
    %p85 = scmp.le.s32.totalorder 1, %s7
    %p86 = scmp.lt.s32.totalorder %s7, 3
    %p87 = pnand %p85, %p86
    %p88 = pneg %p87
    // Predicated region
    $region21: #{_block_forward.6} parent=5 // pred_check
      _
    $region22: #{_block_forward.6} parent=5 // pred_check_branch
      %90 = sbr.rel (%p87) target = $region24
    $region23: #{_block_forward.6} parent=5 // pred_region
      %s91 = ssub.s32 %s7, 1
      %p92 = scmp.lt.s32.totalorder %s12, 1
      %s93 = scalar_select %p92, %s12, 1
      %s94 = smul.addr %s93, 4
      %s95 = scalar_lea.vmem %s0, %s94
      %p96 = pneg %p33
      %p97 = pneg %p30
      %p98 = pneg %p59
      %p99 = pneg %p56
      %p100 = scmp.lt.s32.totalorder %s12, 1
      %s101 = scalar_select %p100, %s12, 1
      %s102 = smul.addr %s101, 4
      %s103 = scalar_lea.vmem %s1, %s102
      %p104 = scmp.lt.s32.totalorder %s12, 1
      %s105 = scalar_select %p104, %s12, 1
      %s106 = smul.addr %s105, 4
      %s107 = scalar_lea.vmem %s0, %s106
      %p108 = scmp.lt.s32.totalorder %s12, 1
      %s109 = scalar_select %p108, %s12, 1
      %s110 = smul.addr %s109, 4
      %s111 = scalar_lea.vmem %s1, %s110
      %v113 = vld [vmem:[%s107] sm:$0xf]
      %v115 = vunpack.c.l.b16 %v113
      %v116 = vpack.c.b16 %v115, %v115
      %117 = vrot.lane.b32.xlu0 %v116, 96
      %v118 = vpop.permute.xlu0 %117
      %vm119 = vcmask 31744
      %v121 = vsel %vm119, %v113, 0
      %v124 = vsel %vm119, %v118, 0
      %126 = vmatprep.subr.bf16.mxu0 0
      %127 = vmatpush1.bf16.xpose.msra.mxu0 %v124
      %128 = vmatprep.subr.bf16.mxu0 0
      %129 = vmatpush1.bf16.xpose.msra.mxu0 0
      %130 = vmatprep.subr.bf16.mxu0 0
      %131 = vmatpush1.bf16.xpose.msra.mxu0 0
      %132 = vmatprep.subr.bf16.mxu0 0
      %133 = vmatpush1.bf16.xpose.msra.mxu0 0
      %134 = vmatprep.subr.bf16.mxu0 0
      %135 = vmatpush1.bf16.xpose.msra.mxu0 0
      %136 = vmatprep.subr.bf16.mxu0 0
      %137 = vmatpush1.bf16.xpose.msra.mxu0 0
      %138 = vmatprep.subr.bf16.mxu0 0
      %139 = vmatpush1.bf16.xpose.msra.mxu0 0
      %140 = vmatprep.subr.bf16.mxu0 0
      %141 = vmatpush1.bf16.xpose.msra.mxu0 0
      %142 = vmatprep.subr.bf16.mxu0 0
      %143 = vmatpush1.bf16.xpose.msra.mxu0 0
      %144 = vmatprep.subr.bf16.mxu0 0
      %145 = vmatpush1.bf16.xpose.msra.mxu0 0
      %146 = vmatprep.subr.bf16.mxu0 0
      %147 = vmatpush1.bf16.xpose.msra.mxu0 0
      %148 = vmatprep.subr.bf16.mxu0 0
      %149 = vmatpush1.bf16.xpose.msra.mxu0 0
      %150 = vmatprep.subr.bf16.mxu0 0
      %151 = vmatpush1.bf16.xpose.msra.mxu0 0
      %152 = vmatprep.subr.bf16.mxu0 0
      %153 = vmatpush1.bf16.xpose.msra.mxu0 0
      %154 = vmatprep.subr.bf16.mxu0 0
      %155 = vmatpush1.bf16.xpose.msra.mxu0 0
      %156 = vmatprep.subr.bf16.mxu0 0
      %157 = vmatpush1.bf16.xpose.msra.mxu0 0
      %158 = vmatprep.mubr.bf16.mxu0 0
      %159 = vmatmul.mubr.bf16.gmra.mrb[0].mxu0 %v121
      %v160 = vpop.f32.mrb[0].mxu0
      %v161 = vadd.f32 0.0, %v160
      %v162 = vpop.f32.mrb[0].mxu0
      %v163 = vpop.f32.mrb[0].mxu0
      %v164 = vpop.f32.mrb[0].mxu0
      %165 = vdwg.mxu0
      %v166 = vmul.f32 %v161, 0.5
      %vm167 = vcmask 64512
      %v168 = vsel %vm167, %v166, -inf
      %169 = vmax.xlane.f32.xlu0 %v168
      %v170 = vpop.xlane.xlu0 %169
      %v171 = vsub.f32 %v166, %v170
      %v172 = vmul.f32 %v171, 1.442695
      %v173 = vpow.pop %v172
      %v174 = vsel %vm167, %v173, 0.0
      %175 = vadd.xlane.f32.xlu0 %v174
      %v176 = vpop.xlane.xlu0 %175
      %v177 = vrcp.pop %v176
      %v178 = vmul.f32 %v173, %v177
      %v179 = vpack.c.bf16 %v178, %v178
      %180 = vrot.lane.b32.xlu0 %v116, 64
      %v181 = vpop.permute.xlu0 %180
      %v183 = vsel %vm167, %v179, 0
      %vm185 = vcmask 1043456
      %v187 = vsel %vm185, %v181, 0
      %189 = vmatprep.subr.bf16.mxu0 0
      %190 = vmatpush1.bf16.msra.mxu0 %v187
      %191 = vmatprep.subr.bf16.mxu0 0
      %192 = vmatpush1.bf16.msra.mxu0 0
      %193 = vmatprep.subr.bf16.mxu0 0
      %194 = vmatpush1.bf16.msra.mxu0 0
      %195 = vmatprep.subr.bf16.mxu0 0
      %196 = vmatpush1.bf16.msra.mxu0 0
      %197 = vmatprep.subr.bf16.mxu0 0
      %198 = vmatpush1.bf16.msra.mxu0 0
      %199 = vmatprep.subr.bf16.mxu0 0
      %200 = vmatpush1.bf16.msra.mxu0 0
      %201 = vmatprep.subr.bf16.mxu0 0
      %202 = vmatpush1.bf16.msra.mxu0 0
      %203 = vmatprep.subr.bf16.mxu0 0
      %204 = vmatpush1.bf16.msra.mxu0 0
      %205 = vmatprep.subr.bf16.mxu0 0
      %206 = vmatpush1.bf16.msra.mxu0 0
      %207 = vmatprep.subr.bf16.mxu0 0
      %208 = vmatpush1.bf16.msra.mxu0 0
      %209 = vmatprep.subr.bf16.mxu0 0
      %210 = vmatpush1.bf16.msra.mxu0 0
      %211 = vmatprep.subr.bf16.mxu0 0
      %212 = vmatpush1.bf16.msra.mxu0 0
      %213 = vmatprep.subr.bf16.mxu0 0
      %214 = vmatpush1.bf16.msra.mxu0 0
      %215 = vmatprep.subr.bf16.mxu0 0
      %216 = vmatpush1.bf16.msra.mxu0 0
      %217 = vmatprep.subr.bf16.mxu0 0
      %218 = vmatpush1.bf16.msra.mxu0 0
      %219 = vmatprep.subr.bf16.mxu0 0
      %220 = vmatpush1.bf16.msra.mxu0 0
      %221 = vmatprep.mubr.bf16.mxu0 0
      %222 = vmatmul.mubr.bf16.gmra.mrb[0].mxu0 %v183
      %v223 = vpop.f32.mrb[0].mxu0
      %v224 = vadd.f32 0.0, %v223
      %v225 = vpop.f32.mrb[0].mxu0
      %v226 = vpop.f32.mrb[0].mxu0
      %v227 = vpop.f32.mrb[0].mxu0
      %228 = vdwg.mxu0
      %229 = vrot.lane.b32.xlu0 %v116, 124
      %v230 = vpop.permute.xlu0 %229
      %231 = vrot.lane.b32.xlu0 %v116, 92
      %v232 = vpop.permute.xlu0 %231
      %v234 = vsel %vm119, %v230, 0
      %v237 = vsel %vm119, %v232, 0
      %239 = vmatprep.subr.bf16.mxu0 0
      %240 = vmatpush1.bf16.xpose.msra.mxu0 %v237
      %241 = vmatprep.subr.bf16.mxu0 0
      %242 = vmatpush1.bf16.xpose.msra.mxu0 0
      %243 = vmatprep.subr.bf16.mxu0 0
      %244 = vmatpush1.bf16.xpose.msra.mxu0 0
      %245 = vmatprep.subr.bf16.mxu0 0
      %246 = vmatpush1.bf16.xpose.msra.mxu0 0
      %247 = vmatprep.subr.bf16.mxu0 0
      %248 = vmatpush1.bf16.xpose.msra.mxu0 0
      %249 = vmatprep.subr.bf16.mxu0 0
      %250 = vmatpush1.bf16.xpose.msra.mxu0 0
      %251 = vmatprep.subr.bf16.mxu0 0
      %252 = vmatpush1.bf16.xpose.msra.mxu0 0
      %253 = vmatprep.subr.bf16.mxu0 0
      %254 = vmatpush1.bf16.xpose.msra.mxu0 0
      %255 = vmatprep.subr.bf16.mxu0 0
      %256 = vmatpush1.bf16.xpose.msra.mxu0 0
      %257 = vmatprep.subr.bf16.mxu0 0
      %258 = vmatpush1.bf16.xpose.msra.mxu0 0
      %259 = vmatprep.subr.bf16.mxu0 0
      %260 = vmatpush1.bf16.xpose.msra.mxu0 0
      %261 = vmatprep.subr.bf16.mxu0 0
      %262 = vmatpush1.bf16.xpose.msra.mxu0 0
      %263 = vmatprep.subr.bf16.mxu0 0
      %264 = vmatpush1.bf16.xpose.msra.mxu0 0
      %265 = vmatprep.subr.bf16.mxu0 0
      %266 = vmatpush1.bf16.xpose.msra.mxu0 0
      %267 = vmatprep.subr.bf16.mxu0 0
      %268 = vmatpush1.bf16.xpose.msra.mxu0 0
      %269 = vmatprep.subr.bf16.mxu0 0
      %270 = vmatpush1.bf16.xpose.msra.mxu0 0
      %271 = vmatprep.mubr.bf16.mxu0 0
      %272 = vmatmul.mubr.bf16.gmra.mrb[0].mxu0 %v234
      %v273 = vpop.f32.mrb[0].mxu0
      %v274 = vadd.f32 0.0, %v273
      %v275 = vpop.f32.mrb[0].mxu0
      %v276 = vpop.f32.mrb[0].mxu0
      %v277 = vpop.f32.mrb[0].mxu0
      %278 = vdwg.mxu0
      %v279 = vmul.f32 %v274, 0.5
      %v280 = vsel %vm167, %v279, -inf
      %281 = vmax.xlane.f32.xlu0 %v280
      %v282 = vpop.xlane.xlu0 %281
      %v283 = vsub.f32 %v279, %v282
      %v284 = vmul.f32 %v283, 1.442695
      %v285 = vpow.pop %v284
      %v286 = vsel %vm167, %v285, 0.0
      %287 = vadd.xlane.f32.xlu0 %v286
      %v288 = vpop.xlane.xlu0 %287
      %v289 = vrcp.pop %v288
      %v290 = vmul.f32 %v285, %v289
      %v291 = vpack.c.bf16 %v290, %v290
      %292 = vrot.lane.b32.xlu0 %v116, 60
      %v293 = vpop.permute.xlu0 %292
      %v295 = vsel %vm167, %v291, 0
      %v298 = vsel %vm185, %v293, 0
      %300 = vmatprep.subr.bf16.mxu0 0
      %301 = vmatpush1.bf16.msra.mxu0 %v298
      %302 = vmatprep.subr.bf16.mxu0 0
      %303 = vmatpush1.bf16.msra.mxu0 0
      %304 = vmatprep.subr.bf16.mxu0 0
      %305 = vmatpush1.bf16.msra.mxu0 0
      %306 = vmatprep.subr.bf16.mxu0 0
      %307 = vmatpush1.bf16.msra.mxu0 0
      %308 = vmatprep.subr.bf16.mxu0 0
      %309 = vmatpush1.bf16.msra.mxu0 0
      %310 = vmatprep.subr.bf16.mxu0 0
      %311 = vmatpush1.bf16.msra.mxu0 0
      %312 = vmatprep.subr.bf16.mxu0 0
      %313 = vmatpush1.bf16.msra.mxu0 0
      %314 = vmatprep.subr.bf16.mxu0 0
      %315 = vmatpush1.bf16.msra.mxu0 0
      %316 = vmatprep.subr.bf16.mxu0 0
      %317 = vmatpush1.bf16.msra.mxu0 0
      %318 = vmatprep.subr.bf16.mxu0 0
      %319 = vmatpush1.bf16.msra.mxu0 0
      %320 = vmatprep.subr.bf16.mxu0 0
      %321 = vmatpush1.bf16.msra.mxu0 0
      %322 = vmatprep.subr.bf16.mxu0 0
      %323 = vmatpush1.bf16.msra.mxu0 0
      %324 = vmatprep.subr.bf16.mxu0 0
      %325 = vmatpush1.bf16.msra.mxu0 0
      %326 = vmatprep.subr.bf16.mxu0 0
      %327 = vmatpush1.bf16.msra.mxu0 0
      %328 = vmatprep.subr.bf16.mxu0 0
      %329 = vmatpush1.bf16.msra.mxu0 0
      %330 = vmatprep.subr.bf16.mxu0 0
      %331 = vmatpush1.bf16.msra.mxu0 0
      %332 = vmatprep.mubr.bf16.mxu0 0
      %333 = vmatmul.mubr.bf16.gmra.mrb[0].mxu0 %v295
      %v334 = vpop.f32.mrb[0].mxu0
      %v335 = vadd.f32 0.0, %v334
      %v336 = vpop.f32.mrb[0].mxu0
      %v337 = vpop.f32.mrb[0].mxu0
      %v338 = vpop.f32.mrb[0].mxu0
      %339 = vdwg.mxu0
      %340 = vrot.lane.b32.xlu0 %v116, 120
      %v341 = vpop.permute.xlu0 %340
      %342 = vrot.lane.b32.xlu0 %v116, 88
      %v343 = vpop.permute.xlu0 %342
      %v345 = vsel %vm119, %v341, 0
      %v348 = vsel %vm119, %v343, 0
      %350 = vmatprep.subr.bf16.mxu0 0
      %351 = vmatpush1.bf16.xpose.msra.mxu0 %v348
      %352 = vmatprep.subr.bf16.mxu0 0
      %353 = vmatpush1.bf16.xpose.msra.mxu0 0
      %354 = vmatprep.subr.bf16.mxu0 0
      %355 = vmatpush1.bf16.xpose.msra.mxu0 0
      %356 = vmatprep.subr.bf16.mxu0 0
      %357 = vmatpush1.bf16.xpose.msra.mxu0 0
      %358 = vmatprep.subr.bf16.mxu0 0
      %359 = vmatpush1.bf16.xpose.msra.mxu0 0
      %360 = vmatprep.subr.bf16.mxu0 0
      %361 = vmatpush1.bf16.xpose.msra.mxu0 0
      %362 = vmatprep.subr.bf16.mxu0 0
      %363 = vmatpush1.bf16.xpose.msra.mxu0 0
      %364 = vmatprep.subr.bf16.mxu0 0
      %365 = vmatpush1.bf16.xpose.msra.mxu0 0
      %366 = vmatprep.subr.bf16.mxu0 0
      %367 = vmatpush1.bf16.xpose.msra.mxu0 0
      %368 = vmatprep.subr.bf16.mxu0 0
      %369 = vmatpush1.bf16.xpose.msra.mxu0 0
      %370 = vmatprep.subr.bf16.mxu0 0
      %371 = vmatpush1.bf16.xpose.msra.mxu0 0
      %372 = vmatprep.subr.bf16.mxu0 0
      %373 = vmatpush1.bf16.xpose.msra.mxu0 0
      %374 = vmatprep.subr.bf16.mxu0 0
      %375 = vmatpush1.bf16.xpose.msra.mxu0 0
      %376 = vmatprep.subr.bf16.mxu0 0
      %377 = vmatpush1.bf16.xpose.msra.mxu0 0
      %378 = vmatprep.subr.bf16.mxu0 0
      %379 = vmatpush1.bf16.xpose.msra.mxu0 0
      %380 = vmatprep.subr.bf16.mxu0 0
      %381 = vmatpush1.bf16.xpose.msra.mxu0 0
      %382 = vmatprep.mubr.bf16.mxu0 0
      %383 = vmatmul.mubr.bf16.gmra.mrb[0].mxu0 %v345
      %v384 = vpop.f32.mrb[0].mxu0
      %v385 = vadd.f32 0.0, %v384
      %v386 = vpop.f32.mrb[0].mxu0
      %v387 = vpop.f32.mrb[0].mxu0
      %v388 = vpop.f32.mrb[0].mxu0
      %389 = vdwg.mxu0
      %v390 = vmul.f32 %v385, 0.5
      %v391 = vsel %vm167, %v390, -inf
      %392 = vmax.xlane.f32.xlu0 %v391
      %v393 = vpop.xlane.xlu0 %392
      %v394 = vsub.f32 %v390, %v393
      %v395 = vmul.f32 %v394, 1.442695
      %v396 = vpow.pop %v395
      %v397 = vsel %vm167, %v396, 0.0
      %398 = vadd.xlane.f32.xlu0 %v397
      %v399 = vpop.xlane.xlu0 %398
      %v400 = vrcp.pop %v399
      %v401 = vmul.f32 %v396, %v400
      %v402 = vpack.c.bf16 %v401, %v401
      %403 = vrot.lane.b32.xlu0 %v116, 56
      %v404 = vpop.permute.xlu0 %403
      %v406 = vsel %vm167, %v402, 0
      %v409 = vsel %vm185, %v404, 0
      %411 = vmatprep.subr.bf16.mxu0 0
      %412 = vmatpush1.bf16.msra.mxu0 %v409
      %413 = vmatprep.subr.bf16.mxu0 0
      %414 = vmatpush1.bf16.msra.mxu0 0
      %415 = vmatprep.subr.bf16.mxu0 0
      %416 = vmatpush1.bf16.msra.mxu0 0
      %417 = vmatprep.subr.bf16.mxu0 0
      %418 = vmatpush1.bf16.msra.mxu0 0
      %419 = vmatprep.subr.bf16.mxu0 0
      %420 = vmatpush1.bf16.msra.mxu0 0
      %421 = vmatprep.subr.bf16.mxu0 0
      %422 = vmatpush1.bf16.msra.mxu0 0
      %423 = vmatprep.subr.bf16.mxu0 0
      %424 = vmatpush1.bf16.msra.mxu0 0
      %425 = vmatprep.subr.bf16.mxu0 0
      %426 = vmatpush1.bf16.msra.mxu0 0
      %427 = vmatprep.subr.bf16.mxu0 0
      %428 = vmatpush1.bf16.msra.mxu0 0
      %429 = vmatprep.subr.bf16.mxu0 0
      %430 = vmatpush1.bf16.msra.mxu0 0
      %431 = vmatprep.subr.bf16.mxu0 0
      %432 = vmatpush1.bf16.msra.mxu0 0
      %433 = vmatprep.subr.bf16.mxu0 0
      %434 = vmatpush1.bf16.msra.mxu0 0
      %435 = vmatprep.subr.bf16.mxu0 0
      %436 = vmatpush1.bf16.msra.mxu0 0
      %437 = vmatprep.subr.bf16.mxu0 0
      %438 = vmatpush1.bf16.msra.mxu0 0
      %439 = vmatprep.subr.bf16.mxu0 0
      %440 = vmatpush1.bf16.msra.mxu0 0
      %441 = vmatprep.subr.bf16.mxu0 0
      %442 = vmatpush1.bf16.msra.mxu0 0
      %443 = vmatprep.mubr.bf16.mxu0 0
      %444 = vmatmul.mubr.bf16.gmra.mrb[0].mxu0 %v406
      %v445 = vpop.f32.mrb[0].mxu0
      %v446 = vadd.f32 0.0, %v445
      %v447 = vpop.f32.mrb[0].mxu0
      %v448 = vpop.f32.mrb[0].mxu0
      %v449 = vpop.f32.mrb[0].mxu0
      %450 = vdwg.mxu0
      %451 = vrot.lane.b32.xlu0 %v116, 116
      %v452 = vpop.permute.xlu0 %451
      %453 = vrot.lane.b32.xlu0 %v116, 84
      %v454 = vpop.permute.xlu0 %453
      %v456 = vsel %vm119, %v452, 0
      %v459 = vsel %vm119, %v454, 0
      %461 = vmatprep.subr.bf16.mxu0 0
      %462 = vmatpush1.bf16.xpose.msra.mxu0 %v459
      %463 = vmatprep.subr.bf16.mxu0 0
      %464 = vmatpush1.bf16.xpose.msra.mxu0 0
      %465 = vmatprep.subr.bf16.mxu0 0
      %466 = vmatpush1.bf16.xpose.msra.mxu0 0
      %467 = vmatprep.subr.bf16.mxu0 0
      %468 = vmatpush1.bf16.xpose.msra.mxu0 0
      %469 = vmatprep.subr.bf16.mxu0 0
      %470 = vmatpush1.bf16.xpose.msra.mxu0 0
      %471 = vmatprep.subr.bf16.mxu0 0
      %472 = vmatpush1.bf16.xpose.msra.mxu0 0
      %473 = vmatprep.subr.bf16.mxu0 0
      %474 = vmatpush1.bf16.xpose.msra.mxu0 0
      %475 = vmatprep.subr.bf16.mxu0 0
      %476 = vmatpush1.bf16.xpose.msra.mxu0 0
      %477 = vmatprep.subr.bf16.mxu0 0
      %478 = vmatpush1.bf16.xpose.msra.mxu0 0
      %479 = vmatprep.subr.bf16.mxu0 0
      %480 = vmatpush1.bf16.xpose.msra.mxu0 0
      %481 = vmatprep.subr.bf16.mxu0 0
      %482 = vmatpush1.bf16.xpose.msra.mxu0 0
      %483 = vmatprep.subr.bf16.mxu0 0
      %484 = vmatpush1.bf16.xpose.msra.mxu0 0
      %485 = vmatprep.subr.bf16.mxu0 0
      %486 = vmatpush1.bf16.xpose.msra.mxu0 0
      %487 = vmatprep.subr.bf16.mxu0 0
      %488 = vmatpush1.bf16.xpose.msra.mxu0 0
      %489 = vmatprep.subr.bf16.mxu0 0
      %490 = vmatpush1.bf16.xpose.msra.mxu0 0
      %491 = vmatprep.subr.bf16.mxu0 0
      %492 = vmatpush1.bf16.xpose.msra.mxu0 0
      %493 = vmatprep.mubr.bf16.mxu0 0
      %494 = vmatmul.mubr.bf16.gmra.mrb[0].mxu0 %v456
      %v495 = vpop.f32.mrb[0].mxu0
      %v496 = vadd.f32 0.0, %v495
      %v497 = vpop.f32.mrb[0].mxu0
      %v498 = vpop.f32.mrb[0].mxu0
      %v499 = vpop.f32.mrb[0].mxu0
      %500 = vdwg.mxu0
      %v501 = vmul.f32 %v496, 0.5
      %v502 = vsel %vm167, %v501, -inf
      %503 = vmax.xlane.f32.xlu0 %v502
      %v504 = vpop.xlane.xlu0 %503
      %v505 = vsub.f32 %v501, %v504
      %v506 = vmul.f32 %v505, 1.442695
      %v507 = vpow.pop %v506
      %v508 = vsel %vm167, %v507, 0.0
      %509 = vadd.xlane.f32.xlu0 %v508
      %v510 = vpop.xlane.xlu0 %509
      %v511 = vrcp.pop %v510
      %v512 = vmul.f32 %v507, %v511
      %v513 = vpack.c.bf16 %v512, %v512
      %514 = vrot.lane.b32.xlu0 %v116, 52
      %v515 = vpop.permute.xlu0 %514
      %v517 = vsel %vm167, %v513, 0
      %v520 = vsel %vm185, %v515, 0
      %522 = vmatprep.subr.bf16.mxu0 0
      %523 = vmatpush1.bf16.msra.mxu0 %v520
      %524 = vmatprep.subr.bf16.mxu0 0
      %525 = vmatpush1.bf16.msra.mxu0 0
      %526 = vmatprep.subr.bf16.mxu0 0
      %527 = vmatpush1.bf16.msra.mxu0 0
      %528 = vmatprep.subr.bf16.mxu0 0
      %529 = vmatpush1.bf16.msra.mxu0 0
      %530 = vmatprep.subr.bf16.mxu0 0
      %531 = vmatpush1.bf16.msra.mxu0 0
      %532 = vmatprep.subr.bf16.mxu0 0
      %533 = vmatpush1.bf16.msra.mxu0 0
      %534 = vmatprep.subr.bf16.mxu0 0
      %535 = vmatpush1.bf16.msra.mxu0 0
      %536 = vmatprep.subr.bf16.mxu0 0
      %537 = vmatpush1.bf16.msra.mxu0 0
      %538 = vmatprep.subr.bf16.mxu0 0
      %539 = vmatpush1.bf16.msra.mxu0 0
      %540 = vmatprep.subr.bf16.mxu0 0
      %541 = vmatpush1.bf16.msra.mxu0 0
      %542 = vmatprep.subr.bf16.mxu0 0
      %543 = vmatpush1.bf16.msra.mxu0 0
      %544 = vmatprep.subr.bf16.mxu0 0
      %545 = vmatpush1.bf16.msra.mxu0 0
      %546 = vmatprep.subr.bf16.mxu0 0
      %547 = vmatpush1.bf16.msra.mxu0 0
      %548 = vmatprep.subr.bf16.mxu0 0
      %549 = vmatpush1.bf16.msra.mxu0 0
      %550 = vmatprep.subr.bf16.mxu0 0
      %551 = vmatpush1.bf16.msra.mxu0 0
      %552 = vmatprep.subr.bf16.mxu0 0
      %553 = vmatpush1.bf16.msra.mxu0 0
      %554 = vmatprep.mubr.bf16.mxu0 0
      %555 = vmatmul.mubr.bf16.gmra.mrb[0].mxu0 %v517
      %v556 = vpop.f32.mrb[0].mxu0
      %v557 = vadd.f32 0.0, %v556
      %v558 = vpop.f32.mrb[0].mxu0
      %v559 = vpop.f32.mrb[0].mxu0
      %v560 = vpop.f32.mrb[0].mxu0
      %561 = vdwg.mxu0
      %562 = vrot.lane.b32.xlu0 %v116, 112
      %v563 = vpop.permute.xlu0 %562
      %564 = vrot.lane.b32.xlu0 %v116, 80
      %v565 = vpop.permute.xlu0 %564
      %v567 = vsel %vm119, %v563, 0
      %v570 = vsel %vm119, %v565, 0
      %572 = vmatprep.subr.bf16.mxu0 0
      %573 = vmatpush1.bf16.xpose.msra.mxu0 %v570
      %574 = vmatprep.subr.bf16.mxu0 0
      %575 = vmatpush1.bf16.xpose.msra.mxu0 0
      %576 = vmatprep.subr.bf16.mxu0 0
      %577 = vmatpush1.bf16.xpose.msra.mxu0 0
      %578 = vmatprep.subr.bf16.mxu0 0
      %579 = vmatpush1.bf16.xpose.msra.mxu0 0
      %580 = vmatprep.subr.bf16.mxu0 0
      %581 = vmatpush1.bf16.xpose.msra.mxu0 0
      %582 = vmatprep.subr.bf16.mxu0 0
      %583 = vmatpush1.bf16.xpose.msra.mxu0 0
      %584 = vmatprep.subr.bf16.mxu0 0
      %585 = vmatpush1.bf16.xpose.msra.mxu0 0
      %586 = vmatprep.subr.bf16.mxu0 0
      %587 = vmatpush1.bf16.xpose.msra.mxu0 0
      %588 = vmatprep.subr.bf16.mxu0 0
      %589 = vmatpush1.bf16.xpose.msra.mxu0 0
      %590 = vmatprep.subr.bf16.mxu0 0
      %591 = vmatpush1.bf16.xpose.msra.mxu0 0
      %592 = vmatprep.subr.bf16.mxu0 0
      %593 = vmatpush1.bf16.xpose.msra.mxu0 0
      %594 = vmatprep.subr.bf16.mxu0 0
      %595 = vmatpush1.bf16.xpose.msra.mxu0 0
      %596 = vmatprep.subr.bf16.mxu0 0
      %597 = vmatpush1.bf16.xpose.msra.mxu0 0
      %598 = vmatprep.subr.bf16.mxu0 0
      %599 = vmatpush1.bf16.xpose.msra.mxu0 0
      %600 = vmatprep.subr.bf16.mxu0 0
      %601 = vmatpush1.bf16.xpose.msra.mxu0 0
      %602 = vmatprep.subr.bf16.mxu0 0
      %603 = vmatpush1.bf16.xpose.msra.mxu0 0
      %604 = vmatprep.mubr.bf16.mxu0 0
      %605 = vmatmul.mubr.bf16.gmra.mrb[0].mxu0 %v567
      %v606 = vpop.f32.mrb[0].mxu0
      %v607 = vadd.f32 0.0, %v606
      %v608 = vpop.f32.mrb[0].mxu0
      %v609 = vpop.f32.mrb[0].mxu0
      %v610 = vpop.f32.mrb[0].mxu0
      %611 = vdwg.mxu0
      %v612 = vmul.f32 %v607, 0.5
      %v613 = vsel %vm167, %v612, -inf
      %614 = vmax.xlane.f32.xlu0 %v613
      %v615 = vpop.xlane.xlu0 %614
      %v616 = vsub.f32 %v612, %v615
      %v617 = vmul.f32 %v616, 1.442695
      %v618 = vpow.pop %v617
      %v619 = vsel %vm167, %v618, 0.0
      %620 = vadd.xlane.f32.xlu0 %v619
      %v621 = vpop.xlane.xlu0 %620
      %v622 = vrcp.pop %v621
      %v623 = vmul.f32 %v618, %v622
      %v624 = vpack.c.bf16 %v623, %v623
      %625 = vrot.lane.b32.xlu0 %v116, 48
      %v626 = vpop.permute.xlu0 %625
      %v628 = vsel %vm167, %v624, 0
      %v631 = vsel %vm185, %v626, 0
      %633 = vmatprep.subr.bf16.mxu0 0
      %634 = vmatpush1.bf16.msra.mxu0 %v631
      %635 = vmatprep.subr.bf16.mxu0 0
      %636 = vmatpush1.bf16.msra.mxu0 0
      %637 = vmatprep.subr.bf16.mxu0 0
      %638 = vmatpush1.bf16.msra.mxu0 0
      %639 = vmatprep.subr.bf16.mxu0 0
      %640 = vmatpush1.bf16.msra.mxu0 0
      %641 = vmatprep.subr.bf16.mxu0 0
      %642 = vmatpush1.bf16.msra.mxu0 0
      %643 = vmatprep.subr.bf16.mxu0 0
      %644 = vmatpush1.bf16.msra.mxu0 0
      %645 = vmatprep.subr.bf16.mxu0 0
      %646 = vmatpush1.bf16.msra.mxu0 0
      %647 = vmatprep.subr.bf16.mxu0 0
      %648 = vmatpush1.bf16.msra.mxu0 0
      %649 = vmatprep.subr.bf16.mxu0 0
      %650 = vmatpush1.bf16.msra.mxu0 0
      %651 = vmatprep.subr.bf16.mxu0 0
      %652 = vmatpush1.bf16.msra.mxu0 0
      %653 = vmatprep.subr.bf16.mxu0 0
      %654 = vmatpush1.bf16.msra.mxu0 0
      %655 = vmatprep.subr.bf16.mxu0 0
      %656 = vmatpush1.bf16.msra.mxu0 0
      %657 = vmatprep.subr.bf16.mxu0 0
      %658 = vmatpush1.bf16.msra.mxu0 0
      %659 = vmatprep.subr.bf16.mxu0 0
      %660 = vmatpush1.bf16.msra.mxu0 0
      %661 = vmatprep.subr.bf16.mxu0 0
      %662 = vmatpush1.bf16.msra.mxu0 0
      %663 = vmatprep.subr.bf16.mxu0 0
      %664 = vmatpush1.bf16.msra.mxu0 0
      %665 = vmatprep.mubr.bf16.mxu0 0
      %666 = vmatmul.mubr.bf16.gmra.mrb[0].mxu0 %v628
      %v667 = vpop.f32.mrb[0].mxu0
      %v668 = vadd.f32 0.0, %v667
      %v669 = vpop.f32.mrb[0].mxu0
      %v670 = vpop.f32.mrb[0].mxu0
      %v671 = vpop.f32.mrb[0].mxu0
      %672 = vdwg.mxu0
      %673 = vrot.lane.b32.xlu0 %v116, 108
      %v674 = vpop.permute.xlu0 %673
      %675 = vrot.lane.b32.xlu0 %v116, 76
      %v676 = vpop.permute.xlu0 %675
      %v678 = vsel %vm119, %v674, 0
      %v681 = vsel %vm119, %v676, 0
      %683 = vmatprep.subr.bf16.mxu0 0
      %684 = vmatpush1.bf16.xpose.msra.mxu0 %v681
      %685 = vmatprep.subr.bf16.mxu0 0
      %686 = vmatpush1.bf16.xpose.msra.mxu0 0
      %687 = vmatprep.subr.bf16.mxu0 0
      %688 = vmatpush1.bf16.xpose.msra.mxu0 0
      %689 = vmatprep.subr.bf16.mxu0 0
      %690 = vmatpush1.bf16.xpose.msra.mxu0 0
      %691 = vmatprep.subr.bf16.mxu0 0
      %692 = vmatpush1.bf16.xpose.msra.mxu0 0
      %693 = vmatprep.subr.bf16.mxu0 0
      %694 = vmatpush1.bf16.xpose.msra.mxu0 0
      %695 = vmatprep.subr.bf16.mxu0 0
      %696 = vmatpush1.bf16.xpose.msra.mxu0 0
      %697 = vmatprep.subr.bf16.mxu0 0
      %698 = vmatpush1.bf16.xpose.msra.mxu0 0
      %699 = vmatprep.subr.bf16.mxu0 0
      %700 = vmatpush1.bf16.xpose.msra.mxu0 0
      %701 = vmatprep.subr.bf16.mxu0 0
      %702 = vmatpush1.bf16.xpose.msra.mxu0 0
      %703 = vmatprep.subr.bf16.mxu0 0
      %704 = vmatpush1.bf16.xpose.msra.mxu0 0
      %705 = vmatprep.subr.bf16.mxu0 0
      %706 = vmatpush1.bf16.xpose.msra.mxu0 0
      %707 = vmatprep.subr.bf16.mxu0 0
      %708 = vmatpush1.bf16.xpose.msra.mxu0 0
      %709 = vmatprep.subr.bf16.mxu0 0
      %710 = vmatpush1.bf16.xpose.msra.mxu0 0
      %711 = vmatprep.subr.bf16.mxu0 0
      %712 = vmatpush1.bf16.xpose.msra.mxu0 0
      %713 = vmatprep.subr.bf16.mxu0 0
      %714 = vmatpush1.bf16.xpose.msra.mxu0 0
      %715 = vmatprep.mubr.bf16.mxu0 0
      %716 = vmatmul.mubr.bf16.gmra.mrb[0].mxu0 %v678
      %v717 = vpop.f32.mrb[0].mxu0
      %v718 = vadd.f32 0.0, %v717
      %v719 = vpop.f32.mrb[0].mxu0
      %v720 = vpop.f32.mrb[0].mxu0
      %v721 = vpop.f32.mrb[0].mxu0
      %722 = vdwg.mxu0
      %v723 = vmul.f32 %v718, 0.5
      %v724 = vsel %vm167, %v723, -inf
      %725 = vmax.xlane.f32.xlu0 %v724
      %v726 = vpop.xlane.xlu0 %725
      %v727 = vsub.f32 %v723, %v726
      %v728 = vmul.f32 %v727, 1.442695
      %v729 = vpow.pop %v728
      %v730 = vsel %vm167, %v729, 0.0
      %731 = vadd.xlane.f32.xlu0 %v730
      %v732 = vpop.xlane.xlu0 %731
      %v733 = vrcp.pop %v732
      %v734 = vmul.f32 %v729, %v733
      %v735 = vpack.c.bf16 %v734, %v734
      %736 = vrot.lane.b32.xlu0 %v116, 44
      %v737 = vpop.permute.xlu0 %736
      %v739 = vsel %vm167, %v735, 0
      %v742 = vsel %vm185, %v737, 0
      %744 = vmatprep.subr.bf16.mxu0 0
      %745 = vmatpush1.bf16.msra.mxu0 %v742
      %746 = vmatprep.subr.bf16.mxu0 0
      %747 = vmatpush1.bf16.msra.mxu0 0
      %748 = vmatprep.subr.bf16.mxu0 0
      %749 = vmatpush1.bf16.msra.mxu0 0
      %750 = vmatprep.subr.bf16.mxu0 0
      %751 = vmatpush1.bf16.msra.mxu0 0
      %752 = vmatprep.subr.bf16.mxu0 0
      %753 = vmatpush1.bf16.msra.mxu0 0
      %754 = vmatprep.subr.bf16.mxu0 0
      %755 = vmatpush1.bf16.msra.mxu0 0
      %756 = vmatprep.subr.bf16.mxu0 0
      %757 = vmatpush1.bf16.msra.mxu0 0
      %758 = vmatprep.subr.bf16.mxu0 0
      %759 = vmatpush1.bf16.msra.mxu0 0
      %760 = vmatprep.subr.bf16.mxu0 0
      %761 = vmatpush1.bf16.msra.mxu0 0
      %762 = vmatprep.subr.bf16.mxu0 0
      %763 = vmatpush1.bf16.msra.mxu0 0
      %764 = vmatprep.subr.bf16.mxu0 0
      %765 = vmatpush1.bf16.msra.mxu0 0
      %766 = vmatprep.subr.bf16.mxu0 0
      %767 = vmatpush1.bf16.msra.mxu0 0
      %768 = vmatprep.subr.bf16.mxu0 0
      %769 = vmatpush1.bf16.msra.mxu0 0
      %770 = vmatprep.subr.bf16.mxu0 0
      %771 = vmatpush1.bf16.msra.mxu0 0
      %772 = vmatprep.subr.bf16.mxu0 0
      %773 = vmatpush1.bf16.msra.mxu0 0
      %774 = vmatprep.subr.bf16.mxu0 0
      %775 = vmatpush1.bf16.msra.mxu0 0
      %776 = vmatprep.mubr.bf16.mxu0 0
      %777 = vmatmul.mubr.bf16.gmra.mrb[0].mxu0 %v739
      %v778 = vpop.f32.mrb[0].mxu0
      %v779 = vadd.f32 0.0, %v778
      %v780 = vpop.f32.mrb[0].mxu0
      %v781 = vpop.f32.mrb[0].mxu0
      %v782 = vpop.f32.mrb[0].mxu0
      %783 = vdwg.mxu0
      %784 = vrot.lane.b32.xlu0 %v116, 104
      %v785 = vpop.permute.xlu0 %784
      %786 = vrot.lane.b32.xlu0 %v116, 72
      %v787 = vpop.permute.xlu0 %786
      %v789 = vsel %vm119, %v785, 0
      %v792 = vsel %vm119, %v787, 0
      %794 = vmatprep.subr.bf16.mxu0 0
      %795 = vmatpush1.bf16.xpose.msra.mxu0 %v792
      %796 = vmatprep.subr.bf16.mxu0 0
      %797 = vmatpush1.bf16.xpose.msra.mxu0 0
      %798 = vmatprep.subr.bf16.mxu0 0
      %799 = vmatpush1.bf16.xpose.msra.mxu0 0
      %800 = vmatprep.subr.bf16.mxu0 0
      %801 = vmatpush1.bf16.xpose.msra.mxu0 0
      %802 = vmatprep.subr.bf16.mxu0 0
      %803 = vmatpush1.bf16.xpose.msra.mxu0 0
      %804 = vmatprep.subr.bf16.mxu0 0
      %805 = vmatpush1.bf16.xpose.msra.mxu0 0
      %806 = vmatprep.subr.bf16.mxu0 0
      %807 = vmatpush1.bf16.xpose.msra.mxu0 0
      %808 = vmatprep.subr.bf16.mxu0 0
      %809 = vmatpush1.bf16.xpose.msra.mxu0 0
      %810 = vmatprep.subr.bf16.mxu0 0
      %811 = vmatpush1.bf16.xpose.msra.mxu0 0
      %812 = vmatprep.subr.bf16.mxu0 0
      %813 = vmatpush1.bf16.xpose.msra.mxu0 0
      %814 = vmatprep.subr.bf16.mxu0 0
      %815 = vmatpush1.bf16.xpose.msra.mxu0 0
      %816 = vmatprep.subr.bf16.mxu0 0
      %817 = vmatpush1.bf16.xpose.msra.mxu0 0
      %818 = vmatprep.subr.bf16.mxu0 0
      %819 = vmatpush1.bf16.xpose.msra.mxu0 0
      %820 = vmatprep.subr.bf16.mxu0 0
      %821 = vmatpush1.bf16.xpose.msra.mxu0 0
      %822 = vmatprep.subr.bf16.mxu0 0
      %823 = vmatpush1.bf16.xpose.msra.mxu0 0
      %824 = vmatprep.subr.bf16.mxu0 0
      %825 = vmatpush1.bf16.xpose.msra.mxu0 0
      %826 = vmatprep.mubr.bf16.mxu0 0
      %827 = vmatmul.mubr.bf16.gmra.mrb[0].mxu0 %v789
      %v828 = vpop.f32.mrb[0].mxu0
      %v829 = vadd.f32 0.0, %v828
      %v830 = vpop.f32.mrb[0].mxu0
      %v831 = vpop.f32.mrb[0].mxu0
      %v832 = vpop.f32.mrb[0].mxu0
      %833 = vdwg.mxu0
      %v834 = vmul.f32 %v829, 0.5
      %v835 = vsel %vm167, %v834, -inf
      %836 = vmax.xlane.f32.xlu0 %v835
      %v837 = vpop.xlane.xlu0 %836
      %v838 = vsub.f32 %v834, %v837
      %v839 = vmul.f32 %v838, 1.442695
      %v840 = vpow.pop %v839
      %v841 = vsel %vm167, %v840, 0.0
      %842 = vadd.xlane.f32.xlu0 %v841
      %v843 = vpop.xlane.xlu0 %842
      %v844 = vrcp.pop %v843
      %v845 = vmul.f32 %v840, %v844
      %v846 = vpack.c.bf16 %v845, %v845
      %847 = vrot.lane.b32.xlu0 %v116, 40
      %v848 = vpop.permute.xlu0 %847
      %v850 = vsel %vm167, %v846, 0
      %v853 = vsel %vm185, %v848, 0
      %855 = vmatprep.subr.bf16.mxu0 0
      %856 = vmatpush1.bf16.msra.mxu0 %v853
      %857 = vmatprep.subr.bf16.mxu0 0
      %858 = vmatpush1.bf16.msra.mxu0 0
      %859 = vmatprep.subr.bf16.mxu0 0
      %860 = vmatpush1.bf16.msra.mxu0 0
      %861 = vmatprep.subr.bf16.mxu0 0
      %862 = vmatpush1.bf16.msra.mxu0 0
      %863 = vmatprep.subr.bf16.mxu0 0
      %864 = vmatpush1.bf16.msra.mxu0 0
      %865 = vmatprep.subr.bf16.mxu0 0
      %866 = vmatpush1.bf16.msra.mxu0 0
      %867 = vmatprep.subr.bf16.mxu0 0
      %868 = vmatpush1.bf16.msra.mxu0 0
      %869 = vmatprep.subr.bf16.mxu0 0
      %870 = vmatpush1.bf16.msra.mxu0 0
      %871 = vmatprep.subr.bf16.mxu0 0
      %872 = vmatpush1.bf16.msra.mxu0 0
      %873 = vmatprep.subr.bf16.mxu0 0
      %874 = vmatpush1.bf16.msra.mxu0 0
      %875 = vmatprep.subr.bf16.mxu0 0
      %876 = vmatpush1.bf16.msra.mxu0 0
      %877 = vmatprep.subr.bf16.mxu0 0
      %878 = vmatpush1.bf16.msra.mxu0 0
      %879 = vmatprep.subr.bf16.mxu0 0
      %880 = vmatpush1.bf16.msra.mxu0 0
      %881 = vmatprep.subr.bf16.mxu0 0
      %882 = vmatpush1.bf16.msra.mxu0 0
      %883 = vmatprep.subr.bf16.mxu0 0
      %884 = vmatpush1.bf16.msra.mxu0 0
      %885 = vmatprep.subr.bf16.mxu0 0
      %886 = vmatpush1.bf16.msra.mxu0 0
      %887 = vmatprep.mubr.bf16.mxu0 0
      %888 = vmatmul.mubr.bf16.gmra.mrb[0].mxu0 %v850
      %v889 = vpop.f32.mrb[0].mxu0
      %v890 = vadd.f32 0.0, %v889
      %v891 = vpop.f32.mrb[0].mxu0
      %v892 = vpop.f32.mrb[0].mxu0
      %v893 = vpop.f32.mrb[0].mxu0
      %894 = vdwg.mxu0
      %895 = vrot.lane.b32.xlu0 %v116, 100
      %v896 = vpop.permute.xlu0 %895
      %897 = vrot.lane.b32.xlu0 %v116, 68
      %v898 = vpop.permute.xlu0 %897
      %v900 = vsel %vm119, %v896, 0
      %v903 = vsel %vm119, %v898, 0
      %905 = vmatprep.subr.bf16.mxu0 0
      %906 = vmatpush1.bf16.xpose.msra.mxu0 %v903
      %907 = vmatprep.subr.bf16.mxu0 0
      %908 = vmatpush1.bf16.xpose.msra.mxu0 0
      %909 = vmatprep.subr.bf16.mxu0 0
      %910 = vmatpush1.bf16.xpose.msra.mxu0 0
      %911 = vmatprep.subr.bf16.mxu0 0
      %912 = vmatpush1.bf16.xpose.msra.mxu0 0
      %913 = vmatprep.subr.bf16.mxu0 0
      %914 = vmatpush1.bf16.xpose.msra.mxu0 0
      %915 = vmatprep.subr.bf16.mxu0 0
      %916 = vmatpush1.bf16.xpose.msra.mxu0 0
      %917 = vmatprep.subr.bf16.mxu0 0
      %918 = vmatpush1.bf16.xpose.msra.mxu0 0
      %919 = vmatprep.subr.bf16.mxu0 0
      %920 = vmatpush1.bf16.xpose.msra.mxu0 0
      %921 = vmatprep.subr.bf16.mxu0 0
      %922 = vmatpush1.bf16.xpose.msra.mxu0 0
      %923 = vmatprep.subr.bf16.mxu0 0
      %924 = vmatpush1.bf16.xpose.msra.mxu0 0
      %925 = vmatprep.subr.bf16.mxu0 0
      %926 = vmatpush1.bf16.xpose.msra.mxu0 0
      %927 = vmatprep.subr.bf16.mxu0 0
      %928 = vmatpush1.bf16.xpose.msra.mxu0 0
      %929 = vmatprep.subr.bf16.mxu0 0
      %930 = vmatpush1.bf16.xpose.msra.mxu0 0
      %931 = vmatprep.subr.bf16.mxu0 0
      %932 = vmatpush1.bf16.xpose.msra.mxu0 0
      %933 = vmatprep.subr.bf16.mxu0 0
      %934 = vmatpush1.bf16.xpose.msra.mxu0 0
      %935 = vmatprep.subr.bf16.mxu0 0
      %936 = vmatpush1.bf16.xpose.msra.mxu0 0
      %937 = vmatprep.mubr.bf16.mxu0 0
      %938 = vmatmul.mubr.bf16.gmra.mrb[0].mxu0 %v900
      %v939 = vpop.f32.mrb[0].mxu0
      %v940 = vadd.f32 0.0, %v939
      %v941 = vpop.f32.mrb[0].mxu0
      %v942 = vpop.f32.mrb[0].mxu0
      %v943 = vpop.f32.mrb[0].mxu0
      %944 = vdwg.mxu0
      %v945 = vmul.f32 %v940, 0.5
      %v946 = vsel %vm167, %v945, -inf
      %947 = vmax.xlane.f32.xlu0 %v946
      %v948 = vpop.xlane.xlu0 %947
      %v949 = vsub.f32 %v945, %v948
      %v950 = vmul.f32 %v949, 1.442695
      %v951 = vpow.pop %v950
      %v952 = vsel %vm167, %v951, 0.0
      %953 = vadd.xlane.f32.xlu0 %v952
      %v954 = vpop.xlane.xlu0 %953
      %v955 = vrcp.pop %v954
      %v956 = vmul.f32 %v951, %v955
      %v957 = vpack.c.bf16 %v956, %v956
      %958 = vrot.lane.b32.xlu0 %v116, 36
      %v959 = vpop.permute.xlu0 %958
      %v961 = vsel %vm167, %v957, 0
      %v964 = vsel %vm185, %v959, 0
      %966 = vmatprep.subr.bf16.mxu0 0
      %967 = vmatpush1.bf16.msra.mxu0 %v964
      %968 = vmatprep.subr.bf16.mxu0 0
      %969 = vmatpush1.bf16.msra.mxu0 0
      %970 = vmatprep.subr.bf16.mxu0 0
      %971 = vmatpush1.bf16.msra.mxu0 0
      %972 = vmatprep.subr.bf16.mxu0 0
      %973 = vmatpush1.bf16.msra.mxu0 0
      %974 = vmatprep.subr.bf16.mxu0 0
      %975 = vmatpush1.bf16.msra.mxu0 0
      %976 = vmatprep.subr.bf16.mxu0 0
      %977 = vmatpush1.bf16.msra.mxu0 0
      %978 = vmatprep.subr.bf16.mxu0 0
      %979 = vmatpush1.bf16.msra.mxu0 0
      %980 = vmatprep.subr.bf16.mxu0 0
      %981 = vmatpush1.bf16.msra.mxu0 0
      %982 = vmatprep.subr.bf16.mxu0 0
      %983 = vmatpush1.bf16.msra.mxu0 0
      %984 = vmatprep.subr.bf16.mxu0 0
      %985 = vmatpush1.bf16.msra.mxu0 0
      %986 = vmatprep.subr.bf16.mxu0 0
      %987 = vmatpush1.bf16.msra.mxu0 0
      %988 = vmatprep.subr.bf16.mxu0 0
      %989 = vmatpush1.bf16.msra.mxu0 0
      %990 = vmatprep.subr.bf16.mxu0 0
      %991 = vmatpush1.bf16.msra.mxu0 0
      %992 = vmatprep.subr.bf16.mxu0 0
      %993 = vmatpush1.bf16.msra.mxu0 0
      %994 = vmatprep.subr.bf16.mxu0 0
      %995 = vmatpush1.bf16.msra.mxu0 0
      %996 = vmatprep.subr.bf16.mxu0 0
      %997 = vmatpush1.bf16.msra.mxu0 0
      %998 = vmatprep.mubr.bf16.mxu0 0
      %999 = vmatmul.mubr.bf16.gmra.mrb[0].mxu0 %v961
      %v1000 = vpop.f32.mrb[0].mxu0
      %v1001 = vadd.f32 0.0, %v1000
      %v1002 = vpop.f32.mrb[0].mxu0
      %v1003 = vpop.f32.mrb[0].mxu0
      %v1004 = vpop.f32.mrb[0].mxu0
      %1005 = vdwg.mxu0
      %1007 = vrot.lane.b32.xlu0 %v335, 4
      %v1008 = vpop.permute.xlu0 %1007
      %1011 = vrot.lane.b32.xlu0 %v446, 8
      %v1012 = vpop.permute.xlu0 %1011
      %1015 = vrot.lane.b32.xlu0 %v557, 12
      %v1016 = vpop.permute.xlu0 %1015
      %1019 = vrot.lane.b32.xlu0 %v668, 16
      %v1020 = vpop.permute.xlu0 %1019
      %1023 = vrot.lane.b32.xlu0 %v779, 20
      %v1024 = vpop.permute.xlu0 %1023
      %1027 = vrot.lane.b32.xlu0 %v890, 24
      %v1028 = vpop.permute.xlu0 %1027
      %1031 = vrot.lane.b32.xlu0 %v1001, 28
      %v1032 = vpop.permute.xlu0 %1031
      %v1034 = vsel %vm119, %v224, %v1008
      %v1035 = vsel %vm167, %v1034, %v1012
      %vm1036 = vcmask 97280
      %v1037 = vsel %vm1036, %v1035, %v1016
      %vm1038 = vcmask 130048
      %v1039 = vsel %vm1038, %v1037, %v1020
      %vm1040 = vcmask 162816
      %v1041 = vsel %vm1040, %v1039, %v1024
      %vm1042 = vcmask 195584
      %v1043 = vsel %vm1042, %v1041, %v1028
      %vm1044 = vcmask 228352
      %v1045 = vsel %vm1044, %v1043, %v1032
      %v1046 = vpack.c.bf16 %v1045, %v1045
      %vm1047 = vcmask 257024
      %1048 = vst.msk [vmem:[%s111] sm:$0xf] %vm1047, %v1046
      %p1049 = scmp.lt.s32.totalorder %s12, 1
      %s1050 = scalar_select %p1049, %s12, 1
      %s1051 = smul.addr %s1050, 4
      %s1052 = scalar_lea.vmem %s1, %s1051
      // Predicated region
      $region25: #{_block_forward.6} parent=23 // pred_check
        %p1053 = pneg %p56
      $region26: #{_block_forward.6} parent=23 // pred_check_branch
        %1055 = sbr.rel (%p1053) target = $region28
      $region27: #{_block_forward.6} parent=23 // pred_region
        _
      $region28: #{_block_forward.6} parent=23 // pred_fallthru
        _
    $region24: #{_block_forward.6} parent=5 // pred_fallthru
      _
    %p1056 = scmp.le.s32.totalorder 2, %s7
    // Predicated region
    $region29: #{_block_forward.6} parent=5 // pred_check
      %p1057 = pneg %p1056
    $region30: #{_block_forward.6} parent=5 // pred_check_branch
      %1059 = sbr.rel (%p1057) target = $region32
    $region31: #{_block_forward.6} parent=5 // pred_region
      %s1060 = ssub.s32 %s7, 2
      // Predicated region
      $region33: #{_block_forward.6} parent=31 // pred_check
        %p1061 = pneg %p62
      $region34: #{_block_forward.6} parent=31 // pred_check_branch
        %1063 = sbr.rel (%p1061) target = $region36
      $region35: #{_block_forward.6} parent=31 // pred_region
        %p1064 = scmp.lt.s32.totalorder %s13, 1
        %s1065 = scalar_select %p1064, %s13, 1
        %s1066 = smul.addr %s1065, 4
        %s1067 = scalar_lea.vmem %s1, %s1066
      $region36: #{_block_forward.6} parent=31 // pred_fallthru
        _
    $region32: #{_block_forward.6} parent=5 // pred_fallthru
      _
  $region6: #{_block_forward.6} parent=0 // loop_footer
    %s11 = sadd.s32 1, %s7
  $region7: #{_block_forward.6} parent=0 // loop_footer_branch
    %6 = sbr.rel target = $region3
  $region8: #{_block_forward.6} parent=0 // loop_exit
    _

// kernel: _block_forward.9
$region0: #{_block_forward.9}
  #allocation0 [shape = 'u32[]', space=smem, size = 0x4, offset = 0x4, fixed_abs, tag = 'smem constant byte address 0x4 - core index']
  #allocation1 [shape = 'u32[144,128]{1,0:T(1,128)}', space=vmem, size = 0x12000, scoped, tag = 'internal scratch']
  %s0 = inlined_call_operand.vmem [shape: bf16[16,128], index: 0, kind: input, shape index: {}]
  %s1 = inlined_call_operand.vmem [shape: bf16[128,32], index: 1, kind: input, shape index: {}]
  %s2 = inlined_call_operand.vmem [shape: f32[1,32], index: 2, kind: input, shape index: {}]
  %s3 = inlined_call_operand.vmem [shape: f32[16,32], index: 3, kind: input, shape index: {}, may-alias: {3,5}]
  %s4 = inlined_call_operand.vmem [shape: f32[16,1], index: 4, kind: input, shape index: {}]
  %s5 = inlined_call_operand.vmem [shape: f32[16,32], index: 5, kind: output, shape index: {}, may-alias: {3,5}]
  %s6 = sld [smem:[#allocation0]]
  $region30: #{_block_forward.9} parent=0
    _
  %s8 = ssub.s32 1, %s6
  %s9 = scalar_select 0, %s8, %s6
  // Predicated region
  $region2: #{_block_forward.9} parent=0 // pred_check
    _
  $region3: #{_block_forward.9} parent=0 // pred_check_branch
    %11 = sbr.rel (0) target = $region5
  $region4: #{_block_forward.9} parent=0 // pred_region
    _
  $region5: #{_block_forward.9} parent=0 // pred_fallthru
    _
  // Predicated region
  $region6: #{_block_forward.9} parent=0 // pred_check
    _
  $region7: #{_block_forward.9} parent=0 // pred_check_branch
    %13 = sbr.rel (0) target = $region9
  $region8: #{_block_forward.9} parent=0 // pred_region
    _
  $region9: #{_block_forward.9} parent=0 // pred_fallthru
    _
  // Predicated region
  $region10: #{_block_forward.9} parent=0 // pred_check
    _
  $region11: #{_block_forward.9} parent=0 // pred_check_branch
    %15 = sbr.rel (0) target = $region13
  $region12: #{_block_forward.9} parent=0 // pred_region
    _
  $region13: #{_block_forward.9} parent=0 // pred_fallthru
    _
  // Predicated region
  $region14: #{_block_forward.9} parent=0 // pred_check
    _
  $region15: #{_block_forward.9} parent=0 // pred_check_branch
    %17 = sbr.rel (0) target = $region17
  $region16: #{_block_forward.9} parent=0 // pred_region
    _
  $region17: #{_block_forward.9} parent=0 // pred_fallthru
    _
  // Predicated region
  $region18: #{_block_forward.9} parent=0 // pred_check
    _
  $region19: #{_block_forward.9} parent=0 // pred_check_branch
    %19 = sbr.rel (0) target = $region21
  $region20: #{_block_forward.9} parent=0 // pred_region
    _
  $region21: #{_block_forward.9} parent=0 // pred_fallthru
    _
  %v21 = vld [vmem:[%s0] sm:$0xf]
  %v22 = vld [vmem:[%s0 + $0x4] sm:$0xf]
  %v23 = vld [vmem:[%s1] sm:$0xf]
  %v24 = vld [vmem:[%s1 + $0x4] sm:$0xf]
  %v25 = vld [vmem:[%s1 + $0x8] sm:$0xf]
  %v26 = vld [vmem:[%s1 + $0xc] sm:$0xf]
  %v27 = vld [vmem:[%s1 + $0x10] sm:$0xf]
  %v28 = vld [vmem:[%s1 + $0x14] sm:$0xf]
  %v29 = vld [vmem:[%s1 + $0x18] sm:$0xf]
  %v30 = vld [vmem:[%s1 + $0x1c] sm:$0xf]
  %v31 = vld [vmem:[%s1 + $0x20] sm:$0xf]
  %v32 = vld [vmem:[%s1 + $0x24] sm:$0xf]
  %v33 = vld [vmem:[%s1 + $0x28] sm:$0xf]
  %v34 = vld [vmem:[%s1 + $0x2c] sm:$0xf]
  %v35 = vld [vmem:[%s1 + $0x30] sm:$0xf]
  %v36 = vld [vmem:[%s1 + $0x34] sm:$0xf]
  %v37 = vld [vmem:[%s1 + $0x38] sm:$0xf]
  %v38 = vld [vmem:[%s1 + $0x3c] sm:$0xf]
  %v39 = vld [vmem:[%s2] sm:$0x1]
  %v41 = vlaneseq
  %v42 = vshrl.u32 %v41, 7
  %v43 = vsub.s32 0, %v42
  %v44 = vrot.slane %v39, %v43
  %v48 = vunpack.c.l.b16 %v21
  %v49 = vunpack.c.l.b16 %v22
  %v50 = vpack.c.b16 %v49, %v48
  %v68 = vunpack.c.l.b16 %v23
  %v69 = vunpack.c.l.b16 %v24
  %v70 = vunpack.c.l.b16 %v25
  %v71 = vunpack.c.l.b16 %v26
  %v72 = vunpack.c.l.b16 %v27
  %v73 = vunpack.c.l.b16 %v28
  %v74 = vunpack.c.l.b16 %v29
  %v75 = vunpack.c.l.b16 %v30
  %v76 = vunpack.c.l.b16 %v31
  %v77 = vunpack.c.l.b16 %v32
  %v78 = vunpack.c.l.b16 %v33
  %v79 = vunpack.c.l.b16 %v34
  %v80 = vunpack.c.l.b16 %v35
  %v81 = vunpack.c.l.b16 %v36
  %v82 = vunpack.c.l.b16 %v37
  %v83 = vunpack.c.l.b16 %v38
  %v84 = vpack.c.b16 %v69, %v68
  %v85 = vpack.c.b16 %v71, %v70
  %v86 = vpack.c.b16 %v73, %v72
  %v87 = vpack.c.b16 %v75, %v74
  %v88 = vpack.c.b16 %v77, %v76
  %v89 = vpack.c.b16 %v79, %v78
  %v90 = vpack.c.b16 %v81, %v80
  %v91 = vpack.c.b16 %v83, %v82
  %100 = vmatprep.subr.bf16.mxu0 0
  %101 = vmatpush1.bf16.msra.mxu0 %v84
  %102 = vmatprep.subr.bf16.mxu0 0
  %103 = vmatpush1.bf16.msra.mxu0 %v85
  %104 = vmatprep.subr.bf16.mxu0 0
  %105 = vmatpush1.bf16.msra.mxu0 %v86
  %106 = vmatprep.subr.bf16.mxu0 0
  %107 = vmatpush1.bf16.msra.mxu0 %v87
  %108 = vmatprep.subr.bf16.mxu0 0
  %109 = vmatpush1.bf16.msra.mxu0 %v88
  %110 = vmatprep.subr.bf16.mxu0 0
  %111 = vmatpush1.bf16.msra.mxu0 %v89
  %112 = vmatprep.subr.bf16.mxu0 0
  %113 = vmatpush1.bf16.msra.mxu0 %v90
  %114 = vmatprep.subr.bf16.mxu0 0
  %115 = vmatpush1.bf16.msra.mxu0 %v91
  %116 = vmatprep.subr.bf16.mxu0 0
  %117 = vmatpush1.bf16.msra.mxu0 0
  %118 = vmatprep.subr.bf16.mxu0 0
  %119 = vmatpush1.bf16.msra.mxu0 0
  %120 = vmatprep.subr.bf16.mxu0 0
  %121 = vmatpush1.bf16.msra.mxu0 0
  %122 = vmatprep.subr.bf16.mxu0 0
  %123 = vmatpush1.bf16.msra.mxu0 0
  %124 = vmatprep.subr.bf16.mxu0 0
  %125 = vmatpush1.bf16.msra.mxu0 0
  %126 = vmatprep.subr.bf16.mxu0 0
  %127 = vmatpush1.bf16.msra.mxu0 0
  %128 = vmatprep.subr.bf16.mxu0 0
  %129 = vmatpush1.bf16.msra.mxu0 0
  %130 = vmatprep.subr.bf16.mxu0 0
  %131 = vmatpush1.bf16.msra.mxu0 0
  %132 = vmatprep.mubr.bf16.mxu0 0
  %133 = vmatmul.mubr.bf16.gmra.mrb[0].mxu0 %v50
  %v134 = vpop.f32.mrb[0].mxu0
  %v135 = vadd.f32 %v44, %v134
  %v136 = vpop.f32.mrb[0].mxu0
  %v137 = vpop.f32.mrb[0].mxu0
  %v138 = vadd.f32 %v44, %v137
  %v139 = vpop.f32.mrb[0].mxu0
  %140 = vdwg.mxu0
  %v141 = vld [vmem:[%s3] sm:$0xff]
  %v142 = vld [vmem:[%s3 + $0x8] sm:$0xff]
  %v143 = vld [vmem:[%s4] sm:$0xff]
  %v144 = vld [vmem:[%s4 + $0x8] sm:$0xff]
  %146 = vset.pattern.permute.xlu0 0
  %147 = vperm.xlu0 %146, %v143
  %v148 = vpop.permute.xlu0 %147
  %151 = vset.pattern.permute.xlu0 0
  %152 = vperm.xlu0 %151, %v144
  %v153 = vpop.permute.xlu0 %152
  %v155 = vmul.f32 %v148, %v135
  %v156 = vmul.f32 %v153, %v138
  %v157 = vadd.f32 %v141, %v155
  %v158 = vadd.f32 %v142, %v156
  %vm159 = vcmask 261120
  %160 = vst.msk [vmem:[%s5] sm:$0xff] %vm159, %v157
  %161 = vst.msk [vmem:[%s5 + $0x8] sm:$0xff] %vm159, %v158
  // Predicated region
  $region22: #{_block_forward.9} parent=0 // pred_check
    _
  $region23: #{_block_forward.9} parent=0 // pred_check_branch
    %163 = sbr.rel (0) target = $region25
  $region24: #{_block_forward.9} parent=0 // pred_region
    _
  $region25: #{_block_forward.9} parent=0 // pred_fallthru
    _
  // Predicated region
  $region26: #{_block_forward.9} parent=0 // pred_check
    _
  $region27: #{_block_forward.9} parent=0 // pred_check_branch
    %165 = sbr.rel (0) target = $region29
  $region28: #{_block_forward.9} parent=0 // pred_region
    _
  $region29: #{_block_forward.9} parent=0 // pred_fallthru
    _

</llo_original>
